<compile_context>
chip_gen: v7x
topology: tpu7x:2x2x1
jax: 0.10.0
libtpu: 0.0.40
codegen_flags: <defaults>
</compile_context>

<pallas_src>
import jax
import jax.numpy as jnp
from jax.experimental import pallas as pl
from jax.experimental.pallas import tpu as pltpu


LANES = 128  # lane width: pad the final (num_actions) dim up to a multiple of this


# ----------------------------------------------------------------------------
# Fused forward pass over one batch block. Operates on whatever tile of the
# batch the BlockSpecs hand it; intermediates (h1, h2) never leave VMEM/vregs.
# ----------------------------------------------------------------------------
def dqn_kernel(x_ref, w1_ref, b1_ref, w2_ref, b2_ref, w3_ref, b3_ref, o_ref):
    # x.view(B, -1) / 255 in fp32, then cast to bf16 for the MXU.
    x = (x_ref[...].astype(jnp.float32) * (1.0 / 255.0)).astype(jnp.bfloat16)

    # Linear(input_size, 1024) + ReLU   (bf16 operands, fp32 accumulation/epilogue)
    h1 = jnp.dot(x, w1_ref[...], preferred_element_type=jnp.float32) + b1_ref[...]
    h1 = jnp.maximum(h1, 0.0).astype(jnp.bfloat16)

    # Linear(1024, 128) + ReLU
    h2 = jnp.dot(h1, w2_ref[...], preferred_element_type=jnp.float32) + b2_ref[...]
    h2 = jnp.maximum(h2, 0.0).astype(jnp.bfloat16)

    # Linear(128, num_actions_padded)   (lane-dense padded output)
    o_ref[...] = (
        jnp.dot(h2, w3_ref[...], preferred_element_type=jnp.float32) + b3_ref[...]
    ).astype(o_ref.dtype)


def dqn_forward(x, params, num_actions, block_b=256):
    """x: [B, H, W] raw (0..255) state. Returns q-values [B, num_actions] (fp32)."""
    w1, b1, w2, b2, w3, b3 = params
    B = x.shape[0]
    x_flat = x.reshape(B, -1).astype(jnp.float32)
    in_features = x_flat.shape[1]
    padded_actions = w3.shape[1]

    if B <= block_b:
        # Small batch: single untiled block per operand, no pipelining machinery,
        # no double-buffering. Everything is VMEM-resident for the whole call.
        vmem = lambda: pl.BlockSpec(memory_space=pltpu.MemorySpace.VMEM)
        q_padded = pl.pallas_call(
            dqn_kernel,
            out_shape=jax.ShapeDtypeStruct((B, padded_actions), jnp.float32),
            in_specs=[vmem() for _ in range(7)],
            out_specs=vmem(),
        )(x_flat, w1, b1, w2, b2, w3, b3)
    else:
        # Large batch: tile the batch axis and mark it parallel so both
        # TensorCores (v7x megacore) get work; weights use a constant index_map
        # so they stay resident and are not re-streamed per grid step.
        pad_b = (-B) % block_b
        if pad_b:
            x_flat = jnp.pad(x_flat, ((0, pad_b), (0, 0)))
        bp = B + pad_b

        const = lambda shape: pl.BlockSpec(shape, lambda i: (0, 0))
        q_padded = pl.pallas_call(
            dqn_kernel,
            out_shape=jax.ShapeDtypeStruct((bp, padded_actions), jnp.float32),
            grid=(bp // block_b,),
            in_specs=[
                pl.BlockSpec((block_b, in_features), lambda i: (i, 0)),
                const(w1.shape), const(b1.shape),
                const(w2.shape), const(b2.shape),
                const(w3.shape), const(b3.shape),
            ],
            out_specs=pl.BlockSpec((block_b, padded_actions), lambda i: (i, 0)),
            compiler_params=pltpu.CompilerParams(
                dimension_semantics=("parallel",)),
        )(x_flat, w1, b1, w2, b2, w3, b3)
        q_padded = q_padded[:B]

    return q_padded[:, :num_actions]


def init_params(key, in_features, num_actions):
    """Mimics nn.Linear default init (uniform +-1/sqrt(fan_in)).
    Weights are [in, out] (transpose of PyTorch's [out, in]) and stored in bf16;
    biases are [1, out] fp32. The last layer is zero-padded to a multiple of 128
    output lanes so the final matmul/store is lane-dense."""
    dims = [(in_features, 1024), (1024, 128), (128, num_actions)]
    params = []
    for li, (fan_in, fan_out) in enumerate(dims):
        key, kw, kb = jax.random.split(key, 3)
        bound = 1.0 / (fan_in ** 0.5)
        w = jax.random.uniform(kw, (fan_in, fan_out), jnp.float32, -bound, bound)
        b = jax.random.uniform(kb, (1, fan_out), jnp.float32, -bound, bound)
        if li == len(dims) - 1:
            pad = (-fan_out) % LANES
            if pad:
                w = jnp.pad(w, ((0, 0), (0, pad)))
                b = jnp.pad(b, ((0, 0), (0, pad)))
        params += [w.astype(jnp.bfloat16), b.astype(jnp.float32)]
    return tuple(params)


def dqn_reference(x, params, num_actions):
    """Plain-JAX reference with identical dtype handling (bf16 MXU operands,
    fp32 accumulation) for correctness checking."""
    w1, b1, w2, b2, w3, b3 = params
    B = x.shape[0]
    xf = (x.reshape(B, -1).astype(jnp.float32) / 255.0).astype(jnp.bfloat16)
    h1 = jnp.maximum(jnp.dot(xf, w1, preferred_element_type=jnp.float32) + b1, 0.0)
    h2 = jnp.maximum(
        jnp.dot(h1.astype(jnp.bfloat16), w2, preferred_element_type=jnp.float32) + b2, 0.0)
    q = jnp.dot(h2.astype(jnp.bfloat16), w3, preferred_element_type=jnp.float32) + b3
    return q[:, :num_actions]


if __name__ == "__main__":
    # input_size = (16, 16) -> 256 flattened features; num_actions = 4
    H, W = 16, 16
    num_actions = 4
    B = 8

    key = jax.random.PRNGKey(0)
    key, kx = jax.random.split(key)

    # Synthetic "pixel" state in [0, 255], as the module expects (it divides by 255).
    x = jax.random.uniform(kx, (B, H, W), jnp.float32, 0.0, 255.0)
    params = init_params(key, H * W, num_actions)

    # Small-batch (untiled) path.
    q = jax.block_until_ready(dqn_forward(x, params, num_actions))
    assert q.shape == (B, num_actions)
    ref = dqn_reference(x, params, num_actions)
    assert jnp.allclose(q, ref, atol=2e-3, rtol=2e-3), float(jnp.max(jnp.abs(q - ref)))

    # Batch-tiled path (grid over B, parallel semantics, B padding exercised).
    key, kx2 = jax.random.split(key)
    B2 = 320
    x2 = jax.random.uniform(kx2, (B2, H, W), jnp.float32, 0.0, 255.0)
    q2 = jax.block_until_ready(dqn_forward(x2, params, num_actions, block_b=128))
    assert q2.shape == (B2, num_actions)
    ref2 = dqn_reference(x2, params, num_actions)
    assert jnp.allclose(q2, ref2, atol=2e-3, rtol=2e-3), float(jnp.max(jnp.abs(q2 - ref2)))

    # TODO(synk): DQN.act()'s host-side epsilon-greedy (python `random`) is policy
    # logic outside the forward pass and is intentionally not in the kernel.
    print("KERNEL_OK")
</pallas_src>

<mosaic_0001>
module attributes {stable_mosaic.version = 11 : i64} {
  func.func @dqn_kernel(%arg0: memref<8x256xf32, #tpu.memory_space<vmem>>, %arg1: memref<256x1024xbf16, #tpu.memory_space<vmem>>, %arg2: memref<1x1024xf32, #tpu.memory_space<vmem>>, %arg3: memref<1024x128xbf16, #tpu.memory_space<vmem>>, %arg4: memref<1x128xf32, #tpu.memory_space<vmem>>, %arg5: memref<128x128xbf16, #tpu.memory_space<vmem>>, %arg6: memref<1x128xf32, #tpu.memory_space<vmem>>, %arg7: memref<8x128xf32, #tpu.memory_space<vmem>>) attributes {dimension_semantics = [], scalar_prefetch = 0 : i64, scratch_operands = 0 : i64, tpu.core_type = #tpu.core_type<tc>} {
    %c0 = arith.constant 0 : index
    %c0_0 = arith.constant 0 : index
    %0 = vector.load %arg0[%c0, %c0_0] : memref<8x256xf32, #tpu.memory_space<vmem>>, vector<8x256xf32>
    %cst = arith.constant 0.00392156886 : f32
    %1 = vector.broadcast %cst : f32 to vector<8x256xf32>
    %2 = arith.mulf %0, %1 : vector<8x256xf32>
    %3 = arith.truncf %2 : vector<8x256xf32> to vector<8x256xbf16>
    %c0_1 = arith.constant 0 : index
    %c0_2 = arith.constant 0 : index
    %4 = vector.load %arg1[%c0_1, %c0_2] : memref<256x1024xbf16, #tpu.memory_space<vmem>>, vector<256x1024xbf16>
    %cst_3 = arith.constant dense<0.000000e+00> : vector<8x1024xf32>
    %5 = tpu.matmul %3, %4, %cst_3 {dimension_numbers = #tpu.dot_dimension_numbers<[1], [0], [0], [1], [0, 0, 1, 1], [], []>} : vector<8x256xbf16>, vector<256x1024xbf16>, vector<8x1024xf32> -> vector<8x1024xf32>
    %c0_4 = arith.constant 0 : index
    %c0_5 = arith.constant 0 : index
    %6 = vector.load %arg2[%c0_4, %c0_5] : memref<1x1024xf32, #tpu.memory_space<vmem>>, vector<1x1024xf32>
    %7 = vector.broadcast %6 : vector<1x1024xf32> to vector<8x1024xf32>
    %8 = arith.addf %5, %7 : vector<8x1024xf32>
    %cst_6 = arith.constant 0.000000e+00 : f32
    %9 = vector.broadcast %cst_6 : f32 to vector<8x1024xf32>
    %10 = arith.maximumf %8, %9 : vector<8x1024xf32>
    %11 = arith.truncf %10 : vector<8x1024xf32> to vector<8x1024xbf16>
    %c0_7 = arith.constant 0 : index
    %c0_8 = arith.constant 0 : index
    %12 = vector.load %arg3[%c0_7, %c0_8] : memref<1024x128xbf16, #tpu.memory_space<vmem>>, vector<1024x128xbf16>
    %cst_9 = arith.constant dense<0.000000e+00> : vector<8x128xf32>
    %13 = tpu.matmul %11, %12, %cst_9 {dimension_numbers = #tpu.dot_dimension_numbers<[1], [0], [0], [1], [0, 0, 1, 1], [], []>} : vector<8x1024xbf16>, vector<1024x128xbf16>, vector<8x128xf32> -> vector<8x128xf32>
    %c0_10 = arith.constant 0 : index
    %c0_11 = arith.constant 0 : index
    %14 = vector.load %arg4[%c0_10, %c0_11] : memref<1x128xf32, #tpu.memory_space<vmem>>, vector<1x128xf32>
    %15 = vector.broadcast %14 : vector<1x128xf32> to vector<8x128xf32>
    %16 = arith.addf %13, %15 : vector<8x128xf32>
    %cst_12 = arith.constant 0.000000e+00 : f32
    %17 = vector.broadcast %cst_12 : f32 to vector<8x128xf32>
    %18 = arith.maximumf %16, %17 : vector<8x128xf32>
    %19 = arith.truncf %18 : vector<8x128xf32> to vector<8x128xbf16>
    %c0_13 = arith.constant 0 : index
    %c0_14 = arith.constant 0 : index
    %20 = vector.load %arg5[%c0_13, %c0_14] : memref<128x128xbf16, #tpu.memory_space<vmem>>, vector<128x128xbf16>
    %cst_15 = arith.constant dense<0.000000e+00> : vector<8x128xf32>
    %21 = tpu.matmul %19, %20, %cst_15 {dimension_numbers = #tpu.dot_dimension_numbers<[1], [0], [0], [1], [0, 0, 1, 1], [], []>} : vector<8x128xbf16>, vector<128x128xbf16>, vector<8x128xf32> -> vector<8x128xf32>
    %c0_16 = arith.constant 0 : index
    %c0_17 = arith.constant 0 : index
    %22 = vector.load %arg6[%c0_16, %c0_17] : memref<1x128xf32, #tpu.memory_space<vmem>>, vector<1x128xf32>
    %23 = vector.broadcast %22 : vector<1x128xf32> to vector<8x128xf32>
    %24 = arith.addf %21, %23 : vector<8x128xf32>
    %c0_18 = arith.constant 0 : index
    %c0_19 = arith.constant 0 : index
    %25 = vector.load %arg7[%c0_18, %c0_19] : memref<8x128xf32, #tpu.memory_space<vmem>>, vector<8x128xf32>
    tpu.vector_store %arg7[%c0_18, %c0_19], %24 {strides = array<i32>} : memref<8x128xf32, #tpu.memory_space<vmem>>, vector<8x128xf32>,
    return
  }
}

</mosaic_0001>

<llo_original>
// kernel: tpu_custom_call.1
$region0: #{tpu_custom_call.1}
  #allocation0 [shape = 'u32[]', space=smem, size = 0x4, offset = 0x4, fixed_abs, tag = 'smem constant byte address 0x4 - core index']
  #allocation1 [shape = 'u32[144,128]{1,0:T(1,128)}', space=vmem, size = 0x12000, scoped, tag = 'internal scratch']
  %s0 = inlined_call_operand.hbm [shape: f32[8,256], index: 0, kind: input, shape index: {}]
  %s1 = inlined_call_operand.hbm [shape: bf16[256,1024], index: 1, kind: input, shape index: {}]
  %s2 = inlined_call_operand.hbm [shape: f32[1,1024], index: 2, kind: input, shape index: {}]
  %s3 = inlined_call_operand.hbm [shape: bf16[1024,128], index: 3, kind: input, shape index: {}]
  %s4 = inlined_call_operand.vmem [shape: f32[1,128], index: 4, kind: input, shape index: {}]
  %s5 = inlined_call_operand.hbm [shape: bf16[128,128], index: 5, kind: input, shape index: {}]
  %s6 = inlined_call_operand.vmem [shape: f32[1,128], index: 6, kind: input, shape index: {}]
  %s7 = inlined_call_operand.hbm [shape: f32[8,128], index: 7, kind: output, shape index: {}]
  %s8 = sld [smem:[#allocation0]]
  $region58: #{tpu_custom_call.1} parent=0
    _
  %s10 = ssub.s32 1, %s8
  %s11 = scalar_select 0, %s10, %s8
  $region1: #{tpu_custom_call.1} parent=0
    #allocation2 [shape = 'u8[8192]{0}', space=vmem, size = 0x2000, scoped, tag = 'input window, operand 0, single buffered']
    #allocation3 [shape = 's32[1]{0}', space=sflag, size = 0x4, scoped, tag = 'scoped memory for tpu_custom_call.1']
    #allocation4 [shape = 's32[1]{0}', space=sflag, size = 0x4, scoped, tag = 'scoped memory for tpu_custom_call.1']
    #allocation5 [shape = 'u8[524288]{0}', space=vmem, size = 0x80000, scoped, tag = 'input window, operand 1, single buffered']
    #allocation6 [shape = 's32[1]{0}', space=sflag, size = 0x4, scoped, tag = 'scoped memory for tpu_custom_call.1']
    #allocation7 [shape = 'u8[4096]{0}', space=vmem, size = 0x1000, scoped, tag = 'input window, operand 2, single buffered']
    #allocation8 [shape = 'u8[262144]{0}', space=vmem, size = 0x40000, scoped, tag = 'input window, operand 3, single buffered']
    #allocation9 [shape = 's32[1]{0}', space=sflag, size = 0x4, scoped, tag = 'scoped memory for tpu_custom_call.1']
    #allocation10 [shape = 'u8[32768]{0}', space=vmem, size = 0x8000, scoped, tag = 'input window, operand 5, single buffered']
    #allocation11 [shape = 'u8[4096]{0}', space=vmem, size = 0x1000, scoped, tag = 'output window, operand 0, single buffered']
    %12 = vsyncpa [#allocation3], 0
    %13 = vsyncpa [#allocation6], 0
    %14 = vsyncpa [#allocation9], 0
    %15 = vsyncpa [#allocation4], 0
    // Predicated region
    $region2: #{tpu_custom_call.1} parent=1 // pred_check
      _
    $region3: #{tpu_custom_call.1} parent=1 // pred_check_branch
      %17 = sbr.rel (0) target = $region5
    $region4: #{tpu_custom_call.1} parent=1 // pred_region
      %s19 = ssub.s32 256, 256
      %20 = vsyncadd [#allocation3], %s19
      %s22 = sshll.u32 [#allocation2], 4
      %s23 = int_to_ptr.vmem [resolvable:$true] %s22
      %25 = dma.hbm_to_vmem [thread:$0]  %s0, 256, %s23, [#allocation3]
    $region5: #{tpu_custom_call.1} parent=1 // pred_fallthru
      _
    // Predicated region
    $region6: #{tpu_custom_call.1} parent=1 // pred_check
      _
    $region7: #{tpu_custom_call.1} parent=1 // pred_check_branch
      %27 = sbr.rel (0) target = $region9
    $region8: #{tpu_custom_call.1} parent=1 // pred_region
      %s29 = ssub.s32 16384, 16384
      %30 = vsyncadd [#allocation6], %s29
      %s31 = sshll.u32 [#allocation5], 4
      %s32 = int_to_ptr.vmem [resolvable:$true] %s31
      %37 = dma.hbm_to_vmem [thread:$0]  %s1, 16384, %s32, [#allocation6], 512, 512, 32
    $region9: #{tpu_custom_call.1} parent=1 // pred_fallthru
      _
    // Predicated region
    $region10: #{tpu_custom_call.1} parent=1 // pred_check
      _
    $region11: #{tpu_custom_call.1} parent=1 // pred_check_branch
      %39 = sbr.rel (0) target = $region13
    $region12: #{tpu_custom_call.1} parent=1 // pred_region
      %s41 = ssub.s32 128, 128
      %42 = vsyncadd [#allocation6], %s41
      %s44 = sshll.u32 [#allocation7], 4
      %s45 = int_to_ptr.vmem [resolvable:$true] %s44
      %47 = dma.hbm_to_vmem [thread:$0]  %s2, 128, %s45, [#allocation6]
    $region13: #{tpu_custom_call.1} parent=1 // pred_fallthru
      _
    // Predicated region
    $region14: #{tpu_custom_call.1} parent=1 // pred_check
      _
    $region15: #{tpu_custom_call.1} parent=1 // pred_check_branch
      %49 = sbr.rel (0) target = $region17
    $region16: #{tpu_custom_call.1} parent=1 // pred_region
      %s51 = ssub.s32 8192, 8192
      %52 = vsyncadd [#allocation9], %s51
      %s53 = sshll.u32 [#allocation8], 4
      %s54 = int_to_ptr.vmem [resolvable:$true] %s53
      %59 = dma.hbm_to_vmem [thread:$0]  %s3, 8192, %s54, [#allocation9], 64, 64, 4
    $region17: #{tpu_custom_call.1} parent=1 // pred_fallthru
      _
    // Predicated region
    $region18: #{tpu_custom_call.1} parent=1 // pred_check
      _
    $region19: #{tpu_custom_call.1} parent=1 // pred_check_branch
      %61 = sbr.rel (0) target = $region21
    $region20: #{tpu_custom_call.1} parent=1 // pred_region
      _
    $region21: #{tpu_custom_call.1} parent=1 // pred_fallthru
      _
    // Predicated region
    $region22: #{tpu_custom_call.1} parent=1 // pred_check
      _
    $region23: #{tpu_custom_call.1} parent=1 // pred_check_branch
      %63 = sbr.rel (0) target = $region25
    $region24: #{tpu_custom_call.1} parent=1 // pred_region
      %s65 = ssub.s32 1024, 1024
      %66 = vsyncadd [#allocation9], %s65
      %s67 = sshll.u32 [#allocation10], 4
      %s68 = int_to_ptr.vmem [resolvable:$true] %s67
      %73 = dma.hbm_to_vmem [thread:$0]  %s5, 1024, %s68, [#allocation9], 64, 64, 4
    $region25: #{tpu_custom_call.1} parent=1 // pred_fallthru
      _
    // Predicated region
    $region26: #{tpu_custom_call.1} parent=1 // pred_check
      _
    $region27: #{tpu_custom_call.1} parent=1 // pred_check_branch
      %75 = sbr.rel (0) target = $region29
    $region28: #{tpu_custom_call.1} parent=1 // pred_region
      _
    $region29: #{tpu_custom_call.1} parent=1 // pred_fallthru
      _
    // Predicated region
    $region30: #{tpu_custom_call.1} parent=1 // pred_check
      _
    $region31: #{tpu_custom_call.1} parent=1 // pred_check_branch
      %77 = sbr.rel (0) target = $region33
    $region32: #{tpu_custom_call.1} parent=1 // pred_region
      %78 = dma.done [#allocation3], 256
    $region33: #{tpu_custom_call.1} parent=1 // pred_fallthru
      _
    // Predicated region
    $region34: #{tpu_custom_call.1} parent=1 // pred_check
      _
    $region35: #{tpu_custom_call.1} parent=1 // pred_check_branch
      %80 = sbr.rel (0) target = $region37
    $region36: #{tpu_custom_call.1} parent=1 // pred_region
      %81 = dma.done [#allocation6], 16384
    $region37: #{tpu_custom_call.1} parent=1 // pred_fallthru
      _
    // Predicated region
    $region38: #{tpu_custom_call.1} parent=1 // pred_check
      _
    $region39: #{tpu_custom_call.1} parent=1 // pred_check_branch
      %83 = sbr.rel (0) target = $region41
    $region40: #{tpu_custom_call.1} parent=1 // pred_region
      %84 = dma.done [#allocation6], 128
    $region41: #{tpu_custom_call.1} parent=1 // pred_fallthru
      _
    // Predicated region
    $region42: #{tpu_custom_call.1} parent=1 // pred_check
      _
    $region43: #{tpu_custom_call.1} parent=1 // pred_check_branch
      %86 = sbr.rel (0) target = $region45
    $region44: #{tpu_custom_call.1} parent=1 // pred_region
      %87 = dma.done [#allocation9], 8192
    $region45: #{tpu_custom_call.1} parent=1 // pred_fallthru
      _
    // Predicated region
    $region46: #{tpu_custom_call.1} parent=1 // pred_check
      _
    $region47: #{tpu_custom_call.1} parent=1 // pred_check_branch
      %89 = sbr.rel (0) target = $region49
    $region48: #{tpu_custom_call.1} parent=1 // pred_region
      %90 = dma.done [#allocation9], 1024
    $region49: #{tpu_custom_call.1} parent=1 // pred_fallthru
      _
    %v92 = vld [vmem:[#allocation2] sm:$0xff]
    %v93 = vld [vmem:[#allocation2 + $0x8] sm:$0xff]
    %v94 = vmul.f32 %v92, 0.003921569
    %v95 = vmul.f32 %v93, 0.003921569
    %v96 = vpack.c.bf16 %v94, %v94
    %v97 = vpack.c.bf16 %v95, %v95
    %v98 = vld [vmem:[#allocation5] sm:$0xff]
    %v99 = vld [vmem:[#allocation5 + $0x8] sm:$0xff]
    %v100 = vld [vmem:[#allocation5 + $0x10] sm:$0xff]
    %v101 = vld [vmem:[#allocation5 + $0x18] sm:$0xff]
    %v102 = vld [vmem:[#allocation5 + $0x20] sm:$0xff]
    %v103 = vld [vmem:[#allocation5 + $0x28] sm:$0xff]
    %v104 = vld [vmem:[#allocation5 + $0x30] sm:$0xff]
    %v105 = vld [vmem:[#allocation5 + $0x38] sm:$0xff]
    %v106 = vld [vmem:[#allocation5 + $0x40] sm:$0xff]
    %v107 = vld [vmem:[#allocation5 + $0x48] sm:$0xff]
    %v108 = vld [vmem:[#allocation5 + $0x50] sm:$0xff]
    %v109 = vld [vmem:[#allocation5 + $0x58] sm:$0xff]
    %v110 = vld [vmem:[#allocation5 + $0x60] sm:$0xff]
    %v111 = vld [vmem:[#allocation5 + $0x68] sm:$0xff]
    %v112 = vld [vmem:[#allocation5 + $0x70] sm:$0xff]
    %v113 = vld [vmem:[#allocation5 + $0x78] sm:$0xff]
    %v114 = vld [vmem:[#allocation5 + $0x80] sm:$0xff]
    %v115 = vld [vmem:[#allocation5 + $0x88] sm:$0xff]
    %v116 = vld [vmem:[#allocation5 + $0x90] sm:$0xff]
    %v117 = vld [vmem:[#allocation5 + $0x98] sm:$0xff]
    %v118 = vld [vmem:[#allocation5 + $0xa0] sm:$0xff]
    %v119 = vld [vmem:[#allocation5 + $0xa8] sm:$0xff]
    %v120 = vld [vmem:[#allocation5 + $0xb0] sm:$0xff]
    %v121 = vld [vmem:[#allocation5 + $0xb8] sm:$0xff]
    %v122 = vld [vmem:[#allocation5 + $0xc0] sm:$0xff]
    %v123 = vld [vmem:[#allocation5 + $0xc8] sm:$0xff]
    %v124 = vld [vmem:[#allocation5 + $0xd0] sm:$0xff]
    %v125 = vld [vmem:[#allocation5 + $0xd8] sm:$0xff]
    %v126 = vld [vmem:[#allocation5 + $0xe0] sm:$0xff]
    %v127 = vld [vmem:[#allocation5 + $0xe8] sm:$0xff]
    %v128 = vld [vmem:[#allocation5 + $0xf0] sm:$0xff]
    %v129 = vld [vmem:[#allocation5 + $0xf8] sm:$0xff]
    %v130 = vld [vmem:[#allocation5 + $0x100] sm:$0xff]
    %v131 = vld [vmem:[#allocation5 + $0x108] sm:$0xff]
    %v132 = vld [vmem:[#allocation5 + $0x110] sm:$0xff]
    %v133 = vld [vmem:[#allocation5 + $0x118] sm:$0xff]
    %v134 = vld [vmem:[#allocation5 + $0x120] sm:$0xff]
    %v135 = vld [vmem:[#allocation5 + $0x128] sm:$0xff]
    %v136 = vld [vmem:[#allocation5 + $0x130] sm:$0xff]
    %v137 = vld [vmem:[#allocation5 + $0x138] sm:$0xff]
    %v138 = vld [vmem:[#allocation5 + $0x140] sm:$0xff]
    %v139 = vld [vmem:[#allocation5 + $0x148] sm:$0xff]
    %v140 = vld [vmem:[#allocation5 + $0x150] sm:$0xff]
    %v141 = vld [vmem:[#allocation5 + $0x158] sm:$0xff]
    %v142 = vld [vmem:[#allocation5 + $0x160] sm:$0xff]
    %v143 = vld [vmem:[#allocation5 + $0x168] sm:$0xff]
    %v144 = vld [vmem:[#allocation5 + $0x170] sm:$0xff]
    %v145 = vld [vmem:[#allocation5 + $0x178] sm:$0xff]
    %v146 = vld [vmem:[#allocation5 + $0x180] sm:$0xff]
    %v147 = vld [vmem:[#allocation5 + $0x188] sm:$0xff]
    %v148 = vld [vmem:[#allocation5 + $0x190] sm:$0xff]
    %v149 = vld [vmem:[#allocation5 + $0x198] sm:$0xff]
    %v150 = vld [vmem:[#allocation5 + $0x1a0] sm:$0xff]
    %v151 = vld [vmem:[#allocation5 + $0x1a8] sm:$0xff]
    %v152 = vld [vmem:[#allocation5 + $0x1b0] sm:$0xff]
    %v153 = vld [vmem:[#allocation5 + $0x1b8] sm:$0xff]
    %v154 = vld [vmem:[#allocation5 + $0x1c0] sm:$0xff]
    %v155 = vld [vmem:[#allocation5 + $0x1c8] sm:$0xff]
    %v156 = vld [vmem:[#allocation5 + $0x1d0] sm:$0xff]
    %v157 = vld [vmem:[#allocation5 + $0x1d8] sm:$0xff]
    %v158 = vld [vmem:[#allocation5 + $0x1e0] sm:$0xff]
    %v159 = vld [vmem:[#allocation5 + $0x1e8] sm:$0xff]
    %v160 = vld [vmem:[#allocation5 + $0x1f0] sm:$0xff]
    %v161 = vld [vmem:[#allocation5 + $0x1f8] sm:$0xff]
    %v162 = vld [vmem:[#allocation5 + $0x200] sm:$0xff]
    %v163 = vld [vmem:[#allocation5 + $0x208] sm:$0xff]
    %v164 = vld [vmem:[#allocation5 + $0x210] sm:$0xff]
    %v165 = vld [vmem:[#allocation5 + $0x218] sm:$0xff]
    %v166 = vld [vmem:[#allocation5 + $0x220] sm:$0xff]
    %v167 = vld [vmem:[#allocation5 + $0x228] sm:$0xff]
    %v168 = vld [vmem:[#allocation5 + $0x230] sm:$0xff]
    %v169 = vld [vmem:[#allocation5 + $0x238] sm:$0xff]
    %v170 = vld [vmem:[#allocation5 + $0x240] sm:$0xff]
    %v171 = vld [vmem:[#allocation5 + $0x248] sm:$0xff]
    %v172 = vld [vmem:[#allocation5 + $0x250] sm:$0xff]
    %v173 = vld [vmem:[#allocation5 + $0x258] sm:$0xff]
    %v174 = vld [vmem:[#allocation5 + $0x260] sm:$0xff]
    %v175 = vld [vmem:[#allocation5 + $0x268] sm:$0xff]
    %v176 = vld [vmem:[#allocation5 + $0x270] sm:$0xff]
    %v177 = vld [vmem:[#allocation5 + $0x278] sm:$0xff]
    %v178 = vld [vmem:[#allocation5 + $0x280] sm:$0xff]
    %v179 = vld [vmem:[#allocation5 + $0x288] sm:$0xff]
    %v180 = vld [vmem:[#allocation5 + $0x290] sm:$0xff]
    %v181 = vld [vmem:[#allocation5 + $0x298] sm:$0xff]
    %v182 = vld [vmem:[#allocation5 + $0x2a0] sm:$0xff]
    %v183 = vld [vmem:[#allocation5 + $0x2a8] sm:$0xff]
    %v184 = vld [vmem:[#allocation5 + $0x2b0] sm:$0xff]
    %v185 = vld [vmem:[#allocation5 + $0x2b8] sm:$0xff]
    %v186 = vld [vmem:[#allocation5 + $0x2c0] sm:$0xff]
    %v187 = vld [vmem:[#allocation5 + $0x2c8] sm:$0xff]
    %v188 = vld [vmem:[#allocation5 + $0x2d0] sm:$0xff]
    %v189 = vld [vmem:[#allocation5 + $0x2d8] sm:$0xff]
    %v190 = vld [vmem:[#allocation5 + $0x2e0] sm:$0xff]
    %v191 = vld [vmem:[#allocation5 + $0x2e8] sm:$0xff]
    %v192 = vld [vmem:[#allocation5 + $0x2f0] sm:$0xff]
    %v193 = vld [vmem:[#allocation5 + $0x2f8] sm:$0xff]
    %v194 = vld [vmem:[#allocation5 + $0x300] sm:$0xff]
    %v195 = vld [vmem:[#allocation5 + $0x308] sm:$0xff]
    %v196 = vld [vmem:[#allocation5 + $0x310] sm:$0xff]
    %v197 = vld [vmem:[#allocation5 + $0x318] sm:$0xff]
    %v198 = vld [vmem:[#allocation5 + $0x320] sm:$0xff]
    %v199 = vld [vmem:[#allocation5 + $0x328] sm:$0xff]
    %v200 = vld [vmem:[#allocation5 + $0x330] sm:$0xff]
    %v201 = vld [vmem:[#allocation5 + $0x338] sm:$0xff]
    %v202 = vld [vmem:[#allocation5 + $0x340] sm:$0xff]
    %v203 = vld [vmem:[#allocation5 + $0x348] sm:$0xff]
    %v204 = vld [vmem:[#allocation5 + $0x350] sm:$0xff]
    %v205 = vld [vmem:[#allocation5 + $0x358] sm:$0xff]
    %v206 = vld [vmem:[#allocation5 + $0x360] sm:$0xff]
    %v207 = vld [vmem:[#allocation5 + $0x368] sm:$0xff]
    %v208 = vld [vmem:[#allocation5 + $0x370] sm:$0xff]
    %v209 = vld [vmem:[#allocation5 + $0x378] sm:$0xff]
    %v210 = vld [vmem:[#allocation5 + $0x380] sm:$0xff]
    %v211 = vld [vmem:[#allocation5 + $0x388] sm:$0xff]
    %v212 = vld [vmem:[#allocation5 + $0x390] sm:$0xff]
    %v213 = vld [vmem:[#allocation5 + $0x398] sm:$0xff]
    %v214 = vld [vmem:[#allocation5 + $0x3a0] sm:$0xff]
    %v215 = vld [vmem:[#allocation5 + $0x3a8] sm:$0xff]
    %v216 = vld [vmem:[#allocation5 + $0x3b0] sm:$0xff]
    %v217 = vld [vmem:[#allocation5 + $0x3b8] sm:$0xff]
    %v218 = vld [vmem:[#allocation5 + $0x3c0] sm:$0xff]
    %v219 = vld [vmem:[#allocation5 + $0x3c8] sm:$0xff]
    %v220 = vld [vmem:[#allocation5 + $0x3d0] sm:$0xff]
    %v221 = vld [vmem:[#allocation5 + $0x3d8] sm:$0xff]
    %v222 = vld [vmem:[#allocation5 + $0x3e0] sm:$0xff]
    %v223 = vld [vmem:[#allocation5 + $0x3e8] sm:$0xff]
    %v224 = vld [vmem:[#allocation5 + $0x3f0] sm:$0xff]
    %v225 = vld [vmem:[#allocation5 + $0x3f8] sm:$0xff]
    %v226 = vld [vmem:[#allocation7] sm:$0xff]
    %v228 = vlaneseq
    %v229 = vshrl.u32 %v228, 7
    %v230 = vsub.s32 0, %v229
    %v231 = vrot.slane %v226, %v230
    %v232 = vlaneseq
    %v233 = vshrl.u32 %v232, 7
    %v234 = vsub.s32 1, %v233
    %v235 = vrot.slane %v226, %v234
    %v236 = vlaneseq
    %v237 = vshrl.u32 %v236, 7
    %v238 = vsub.s32 2, %v237
    %v239 = vrot.slane %v226, %v238
    %v240 = vlaneseq
    %v241 = vshrl.u32 %v240, 7
    %v242 = vsub.s32 3, %v241
    %v243 = vrot.slane %v226, %v242
    %v244 = vlaneseq
    %v245 = vshrl.u32 %v244, 7
    %v246 = vsub.s32 4, %v245
    %v247 = vrot.slane %v226, %v246
    %v248 = vlaneseq
    %v249 = vshrl.u32 %v248, 7
    %v250 = vsub.s32 5, %v249
    %v251 = vrot.slane %v226, %v250
    %v252 = vlaneseq
    %v253 = vshrl.u32 %v252, 7
    %v254 = vsub.s32 6, %v253
    %v255 = vrot.slane %v226, %v254
    %v256 = vlaneseq
    %v257 = vshrl.u32 %v256, 7
    %v258 = vsub.s32 7, %v257
    %v259 = vrot.slane %v226, %v258
    %v396 = vunpack.c.l.b16 %v98
    %v397 = vunpack.c.h.b16 %v98
    %v398 = vunpack.c.l.b16 %v99
    %v399 = vunpack.c.h.b16 %v99
    %v400 = vunpack.c.l.b16 %v100
    %v401 = vunpack.c.h.b16 %v100
    %v402 = vunpack.c.l.b16 %v101
    %v403 = vunpack.c.h.b16 %v101
    %v404 = vunpack.c.l.b16 %v102
    %v405 = vunpack.c.h.b16 %v102
    %v406 = vunpack.c.l.b16 %v103
    %v407 = vunpack.c.h.b16 %v103
    %v408 = vunpack.c.l.b16 %v104
    %v409 = vunpack.c.h.b16 %v104
    %v410 = vunpack.c.l.b16 %v105
    %v411 = vunpack.c.h.b16 %v105
    %v412 = vunpack.c.l.b16 %v106
    %v413 = vunpack.c.h.b16 %v106
    %v414 = vunpack.c.l.b16 %v107
    %v415 = vunpack.c.h.b16 %v107
    %v416 = vunpack.c.l.b16 %v108
    %v417 = vunpack.c.h.b16 %v108
    %v418 = vunpack.c.l.b16 %v109
    %v419 = vunpack.c.h.b16 %v109
    %v420 = vunpack.c.l.b16 %v110
    %v421 = vunpack.c.h.b16 %v110
    %v422 = vunpack.c.l.b16 %v111
    %v423 = vunpack.c.h.b16 %v111
    %v424 = vunpack.c.l.b16 %v112
    %v425 = vunpack.c.h.b16 %v112
    %v426 = vunpack.c.l.b16 %v113
    %v427 = vunpack.c.h.b16 %v113
    %v428 = vunpack.c.l.b16 %v114
    %v429 = vunpack.c.h.b16 %v114
    %v430 = vunpack.c.l.b16 %v115
    %v431 = vunpack.c.h.b16 %v115
    %v432 = vunpack.c.l.b16 %v116
    %v433 = vunpack.c.h.b16 %v116
    %v434 = vunpack.c.l.b16 %v117
    %v435 = vunpack.c.h.b16 %v117
    %v436 = vunpack.c.l.b16 %v118
    %v437 = vunpack.c.h.b16 %v118
    %v438 = vunpack.c.l.b16 %v119
    %v439 = vunpack.c.h.b16 %v119
    %v440 = vunpack.c.l.b16 %v120
    %v441 = vunpack.c.h.b16 %v120
    %v442 = vunpack.c.l.b16 %v121
    %v443 = vunpack.c.h.b16 %v121
    %v444 = vunpack.c.l.b16 %v122
    %v445 = vunpack.c.h.b16 %v122
    %v446 = vunpack.c.l.b16 %v123
    %v447 = vunpack.c.h.b16 %v123
    %v448 = vunpack.c.l.b16 %v124
    %v449 = vunpack.c.h.b16 %v124
    %v450 = vunpack.c.l.b16 %v125
    %v451 = vunpack.c.h.b16 %v125
    %v452 = vunpack.c.l.b16 %v126
    %v453 = vunpack.c.h.b16 %v126
    %v454 = vunpack.c.l.b16 %v127
    %v455 = vunpack.c.h.b16 %v127
    %v456 = vunpack.c.l.b16 %v128
    %v457 = vunpack.c.h.b16 %v128
    %v458 = vunpack.c.l.b16 %v129
    %v459 = vunpack.c.h.b16 %v129
    %v460 = vunpack.c.l.b16 %v130
    %v461 = vunpack.c.h.b16 %v130
    %v462 = vunpack.c.l.b16 %v131
    %v463 = vunpack.c.h.b16 %v131
    %v464 = vunpack.c.l.b16 %v132
    %v465 = vunpack.c.h.b16 %v132
    %v466 = vunpack.c.l.b16 %v133
    %v467 = vunpack.c.h.b16 %v133
    %v468 = vunpack.c.l.b16 %v134
    %v469 = vunpack.c.h.b16 %v134
    %v470 = vunpack.c.l.b16 %v135
    %v471 = vunpack.c.h.b16 %v135
    %v472 = vunpack.c.l.b16 %v136
    %v473 = vunpack.c.h.b16 %v136
    %v474 = vunpack.c.l.b16 %v137
    %v475 = vunpack.c.h.b16 %v137
    %v476 = vunpack.c.l.b16 %v138
    %v477 = vunpack.c.h.b16 %v138
    %v478 = vunpack.c.l.b16 %v139
    %v479 = vunpack.c.h.b16 %v139
    %v480 = vunpack.c.l.b16 %v140
    %v481 = vunpack.c.h.b16 %v140
    %v482 = vunpack.c.l.b16 %v141
    %v483 = vunpack.c.h.b16 %v141
    %v484 = vunpack.c.l.b16 %v142
    %v485 = vunpack.c.h.b16 %v142
    %v486 = vunpack.c.l.b16 %v143
    %v487 = vunpack.c.h.b16 %v143
    %v488 = vunpack.c.l.b16 %v144
    %v489 = vunpack.c.h.b16 %v144
    %v490 = vunpack.c.l.b16 %v145
    %v491 = vunpack.c.h.b16 %v145
    %v492 = vunpack.c.l.b16 %v146
    %v493 = vunpack.c.h.b16 %v146
    %v494 = vunpack.c.l.b16 %v147
    %v495 = vunpack.c.h.b16 %v147
    %v496 = vunpack.c.l.b16 %v148
    %v497 = vunpack.c.h.b16 %v148
    %v498 = vunpack.c.l.b16 %v149
    %v499 = vunpack.c.h.b16 %v149
    %v500 = vunpack.c.l.b16 %v150
    %v501 = vunpack.c.h.b16 %v150
    %v502 = vunpack.c.l.b16 %v151
    %v503 = vunpack.c.h.b16 %v151
    %v504 = vunpack.c.l.b16 %v152
    %v505 = vunpack.c.h.b16 %v152
    %v506 = vunpack.c.l.b16 %v153
    %v507 = vunpack.c.h.b16 %v153
    %v508 = vunpack.c.l.b16 %v154
    %v509 = vunpack.c.h.b16 %v154
    %v510 = vunpack.c.l.b16 %v155
    %v511 = vunpack.c.h.b16 %v155
    %v512 = vunpack.c.l.b16 %v156
    %v513 = vunpack.c.h.b16 %v156
    %v514 = vunpack.c.l.b16 %v157
    %v515 = vunpack.c.h.b16 %v157
    %v516 = vunpack.c.l.b16 %v158
    %v517 = vunpack.c.h.b16 %v158
    %v518 = vunpack.c.l.b16 %v159
    %v519 = vunpack.c.h.b16 %v159
    %v520 = vunpack.c.l.b16 %v160
    %v521 = vunpack.c.h.b16 %v160
    %v522 = vunpack.c.l.b16 %v161
    %v523 = vunpack.c.h.b16 %v161
    %v524 = vunpack.c.l.b16 %v162
    %v525 = vunpack.c.h.b16 %v162
    %v526 = vunpack.c.l.b16 %v163
    %v527 = vunpack.c.h.b16 %v163
    %v528 = vunpack.c.l.b16 %v164
    %v529 = vunpack.c.h.b16 %v164
    %v530 = vunpack.c.l.b16 %v165
    %v531 = vunpack.c.h.b16 %v165
    %v532 = vunpack.c.l.b16 %v166
    %v533 = vunpack.c.h.b16 %v166
    %v534 = vunpack.c.l.b16 %v167
    %v535 = vunpack.c.h.b16 %v167
    %v536 = vunpack.c.l.b16 %v168
    %v537 = vunpack.c.h.b16 %v168
    %v538 = vunpack.c.l.b16 %v169
    %v539 = vunpack.c.h.b16 %v169
    %v540 = vunpack.c.l.b16 %v170
    %v541 = vunpack.c.h.b16 %v170
    %v542 = vunpack.c.l.b16 %v171
    %v543 = vunpack.c.h.b16 %v171
    %v544 = vunpack.c.l.b16 %v172
    %v545 = vunpack.c.h.b16 %v172
    %v546 = vunpack.c.l.b16 %v173
    %v547 = vunpack.c.h.b16 %v173
    %v548 = vunpack.c.l.b16 %v174
    %v549 = vunpack.c.h.b16 %v174
    %v550 = vunpack.c.l.b16 %v175
    %v551 = vunpack.c.h.b16 %v175
    %v552 = vunpack.c.l.b16 %v176
    %v553 = vunpack.c.h.b16 %v176
    %v554 = vunpack.c.l.b16 %v177
    %v555 = vunpack.c.h.b16 %v177
    %v556 = vunpack.c.l.b16 %v178
    %v557 = vunpack.c.h.b16 %v178
    %v558 = vunpack.c.l.b16 %v179
    %v559 = vunpack.c.h.b16 %v179
    %v560 = vunpack.c.l.b16 %v180
    %v561 = vunpack.c.h.b16 %v180
    %v562 = vunpack.c.l.b16 %v181
    %v563 = vunpack.c.h.b16 %v181
    %v564 = vunpack.c.l.b16 %v182
    %v565 = vunpack.c.h.b16 %v182
    %v566 = vunpack.c.l.b16 %v183
    %v567 = vunpack.c.h.b16 %v183
    %v568 = vunpack.c.l.b16 %v184
    %v569 = vunpack.c.h.b16 %v184
    %v570 = vunpack.c.l.b16 %v185
    %v571 = vunpack.c.h.b16 %v185
    %v572 = vunpack.c.l.b16 %v186
    %v573 = vunpack.c.h.b16 %v186
    %v574 = vunpack.c.l.b16 %v187
    %v575 = vunpack.c.h.b16 %v187
    %v576 = vunpack.c.l.b16 %v188
    %v577 = vunpack.c.h.b16 %v188
    %v578 = vunpack.c.l.b16 %v189
    %v579 = vunpack.c.h.b16 %v189
    %v580 = vunpack.c.l.b16 %v190
    %v581 = vunpack.c.h.b16 %v190
    %v582 = vunpack.c.l.b16 %v191
    %v583 = vunpack.c.h.b16 %v191
    %v584 = vunpack.c.l.b16 %v192
    %v585 = vunpack.c.h.b16 %v192
    %v586 = vunpack.c.l.b16 %v193
    %v587 = vunpack.c.h.b16 %v193
    %v588 = vunpack.c.l.b16 %v194
    %v589 = vunpack.c.h.b16 %v194
    %v590 = vunpack.c.l.b16 %v195
    %v591 = vunpack.c.h.b16 %v195
    %v592 = vunpack.c.l.b16 %v196
    %v593 = vunpack.c.h.b16 %v196
    %v594 = vunpack.c.l.b16 %v197
    %v595 = vunpack.c.h.b16 %v197
    %v596 = vunpack.c.l.b16 %v198
    %v597 = vunpack.c.h.b16 %v198
    %v598 = vunpack.c.l.b16 %v199
    %v599 = vunpack.c.h.b16 %v199
    %v600 = vunpack.c.l.b16 %v200
    %v601 = vunpack.c.h.b16 %v200
    %v602 = vunpack.c.l.b16 %v201
    %v603 = vunpack.c.h.b16 %v201
    %v604 = vunpack.c.l.b16 %v202
    %v605 = vunpack.c.h.b16 %v202
    %v606 = vunpack.c.l.b16 %v203
    %v607 = vunpack.c.h.b16 %v203
    %v608 = vunpack.c.l.b16 %v204
    %v609 = vunpack.c.h.b16 %v204
    %v610 = vunpack.c.l.b16 %v205
    %v611 = vunpack.c.h.b16 %v205
    %v612 = vunpack.c.l.b16 %v206
    %v613 = vunpack.c.h.b16 %v206
    %v614 = vunpack.c.l.b16 %v207
    %v615 = vunpack.c.h.b16 %v207
    %v616 = vunpack.c.l.b16 %v208
    %v617 = vunpack.c.h.b16 %v208
    %v618 = vunpack.c.l.b16 %v209
    %v619 = vunpack.c.h.b16 %v209
    %v620 = vunpack.c.l.b16 %v210
    %v621 = vunpack.c.h.b16 %v210
    %v622 = vunpack.c.l.b16 %v211
    %v623 = vunpack.c.h.b16 %v211
    %v624 = vunpack.c.l.b16 %v212
    %v625 = vunpack.c.h.b16 %v212
    %v626 = vunpack.c.l.b16 %v213
    %v627 = vunpack.c.h.b16 %v213
    %v628 = vunpack.c.l.b16 %v214
    %v629 = vunpack.c.h.b16 %v214
    %v630 = vunpack.c.l.b16 %v215
    %v631 = vunpack.c.h.b16 %v215
    %v632 = vunpack.c.l.b16 %v216
    %v633 = vunpack.c.h.b16 %v216
    %v634 = vunpack.c.l.b16 %v217
    %v635 = vunpack.c.h.b16 %v217
    %v636 = vunpack.c.l.b16 %v218
    %v637 = vunpack.c.h.b16 %v218
    %v638 = vunpack.c.l.b16 %v219
    %v639 = vunpack.c.h.b16 %v219
    %v640 = vunpack.c.l.b16 %v220
    %v641 = vunpack.c.h.b16 %v220
    %v642 = vunpack.c.l.b16 %v221
    %v643 = vunpack.c.h.b16 %v221
    %v644 = vunpack.c.l.b16 %v222
    %v645 = vunpack.c.h.b16 %v222
    %v646 = vunpack.c.l.b16 %v223
    %v647 = vunpack.c.h.b16 %v223
    %v648 = vunpack.c.l.b16 %v224
    %v649 = vunpack.c.h.b16 %v224
    %v650 = vunpack.c.l.b16 %v225
    %v651 = vunpack.c.h.b16 %v225
    %v652 = vpack.c.b16 %v404, %v396
    %v653 = vpack.c.b16 %v405, %v397
    %v654 = vpack.c.b16 %v406, %v398
    %v655 = vpack.c.b16 %v407, %v399
    %v656 = vpack.c.b16 %v408, %v400
    %v657 = vpack.c.b16 %v409, %v401
    %v658 = vpack.c.b16 %v410, %v402
    %v659 = vpack.c.b16 %v411, %v403
    %v660 = vpack.c.b16 %v420, %v412
    %v661 = vpack.c.b16 %v421, %v413
    %v662 = vpack.c.b16 %v422, %v414
    %v663 = vpack.c.b16 %v423, %v415
    %v664 = vpack.c.b16 %v424, %v416
    %v665 = vpack.c.b16 %v425, %v417
    %v666 = vpack.c.b16 %v426, %v418
    %v667 = vpack.c.b16 %v427, %v419
    %v668 = vpack.c.b16 %v436, %v428
    %v669 = vpack.c.b16 %v437, %v429
    %v670 = vpack.c.b16 %v438, %v430
    %v671 = vpack.c.b16 %v439, %v431
    %v672 = vpack.c.b16 %v440, %v432
    %v673 = vpack.c.b16 %v441, %v433
    %v674 = vpack.c.b16 %v442, %v434
    %v675 = vpack.c.b16 %v443, %v435
    %v676 = vpack.c.b16 %v452, %v444
    %v677 = vpack.c.b16 %v453, %v445
    %v678 = vpack.c.b16 %v454, %v446
    %v679 = vpack.c.b16 %v455, %v447
    %v680 = vpack.c.b16 %v456, %v448
    %v681 = vpack.c.b16 %v457, %v449
    %v682 = vpack.c.b16 %v458, %v450
    %v683 = vpack.c.b16 %v459, %v451
    %v684 = vpack.c.b16 %v468, %v460
    %v685 = vpack.c.b16 %v469, %v461
    %v686 = vpack.c.b16 %v470, %v462
    %v687 = vpack.c.b16 %v471, %v463
    %v688 = vpack.c.b16 %v472, %v464
    %v689 = vpack.c.b16 %v473, %v465
    %v690 = vpack.c.b16 %v474, %v466
    %v691 = vpack.c.b16 %v475, %v467
    %v692 = vpack.c.b16 %v484, %v476
    %v693 = vpack.c.b16 %v485, %v477
    %v694 = vpack.c.b16 %v486, %v478
    %v695 = vpack.c.b16 %v487, %v479
    %v696 = vpack.c.b16 %v488, %v480
    %v697 = vpack.c.b16 %v489, %v481
    %v698 = vpack.c.b16 %v490, %v482
    %v699 = vpack.c.b16 %v491, %v483
    %v700 = vpack.c.b16 %v500, %v492
    %v701 = vpack.c.b16 %v501, %v493
    %v702 = vpack.c.b16 %v502, %v494
    %v703 = vpack.c.b16 %v503, %v495
    %v704 = vpack.c.b16 %v504, %v496
    %v705 = vpack.c.b16 %v505, %v497
    %v706 = vpack.c.b16 %v506, %v498
    %v707 = vpack.c.b16 %v507, %v499
    %v708 = vpack.c.b16 %v516, %v508
    %v709 = vpack.c.b16 %v517, %v509
    %v710 = vpack.c.b16 %v518, %v510
    %v711 = vpack.c.b16 %v519, %v511
    %v712 = vpack.c.b16 %v520, %v512
    %v713 = vpack.c.b16 %v521, %v513
    %v714 = vpack.c.b16 %v522, %v514
    %v715 = vpack.c.b16 %v523, %v515
    %v716 = vpack.c.b16 %v532, %v524
    %v717 = vpack.c.b16 %v533, %v525
    %v718 = vpack.c.b16 %v534, %v526
    %v719 = vpack.c.b16 %v535, %v527
    %v720 = vpack.c.b16 %v536, %v528
    %v721 = vpack.c.b16 %v537, %v529
    %v722 = vpack.c.b16 %v538, %v530
    %v723 = vpack.c.b16 %v539, %v531
    %v724 = vpack.c.b16 %v548, %v540
    %v725 = vpack.c.b16 %v549, %v541
    %v726 = vpack.c.b16 %v550, %v542
    %v727 = vpack.c.b16 %v551, %v543
    %v728 = vpack.c.b16 %v552, %v544
    %v729 = vpack.c.b16 %v553, %v545
    %v730 = vpack.c.b16 %v554, %v546
    %v731 = vpack.c.b16 %v555, %v547
    %v732 = vpack.c.b16 %v564, %v556
    %v733 = vpack.c.b16 %v565, %v557
    %v734 = vpack.c.b16 %v566, %v558
    %v735 = vpack.c.b16 %v567, %v559
    %v736 = vpack.c.b16 %v568, %v560
    %v737 = vpack.c.b16 %v569, %v561
    %v738 = vpack.c.b16 %v570, %v562
    %v739 = vpack.c.b16 %v571, %v563
    %v740 = vpack.c.b16 %v580, %v572
    %v741 = vpack.c.b16 %v581, %v573
    %v742 = vpack.c.b16 %v582, %v574
    %v743 = vpack.c.b16 %v583, %v575
    %v744 = vpack.c.b16 %v584, %v576
    %v745 = vpack.c.b16 %v585, %v577
    %v746 = vpack.c.b16 %v586, %v578
    %v747 = vpack.c.b16 %v587, %v579
    %v748 = vpack.c.b16 %v596, %v588
    %v749 = vpack.c.b16 %v597, %v589
    %v750 = vpack.c.b16 %v598, %v590
    %v751 = vpack.c.b16 %v599, %v591
    %v752 = vpack.c.b16 %v600, %v592
    %v753 = vpack.c.b16 %v601, %v593
    %v754 = vpack.c.b16 %v602, %v594
    %v755 = vpack.c.b16 %v603, %v595
    %v756 = vpack.c.b16 %v612, %v604
    %v757 = vpack.c.b16 %v613, %v605
    %v758 = vpack.c.b16 %v614, %v606
    %v759 = vpack.c.b16 %v615, %v607
    %v760 = vpack.c.b16 %v616, %v608
    %v761 = vpack.c.b16 %v617, %v609
    %v762 = vpack.c.b16 %v618, %v610
    %v763 = vpack.c.b16 %v619, %v611
    %v764 = vpack.c.b16 %v628, %v620
    %v765 = vpack.c.b16 %v629, %v621
    %v766 = vpack.c.b16 %v630, %v622
    %v767 = vpack.c.b16 %v631, %v623
    %v768 = vpack.c.b16 %v632, %v624
    %v769 = vpack.c.b16 %v633, %v625
    %v770 = vpack.c.b16 %v634, %v626
    %v771 = vpack.c.b16 %v635, %v627
    %v772 = vpack.c.b16 %v644, %v636
    %v773 = vpack.c.b16 %v645, %v637
    %v774 = vpack.c.b16 %v646, %v638
    %v775 = vpack.c.b16 %v647, %v639
    %v776 = vpack.c.b16 %v648, %v640
    %v777 = vpack.c.b16 %v649, %v641
    %v778 = vpack.c.b16 %v650, %v642
    %v779 = vpack.c.b16 %v651, %v643
    %908 = vmatprep.subr.bf16.mxu0 %v653
    %909 = vmatpush1.bf16.msra.mxu0 %v652
    %910 = vmatprep.subr.bf16.mxu0 %v661
    %911 = vmatpush1.bf16.msra.mxu0 %v660
    %912 = vmatprep.subr.bf16.mxu0 %v669
    %913 = vmatpush1.bf16.msra.mxu0 %v668
    %914 = vmatprep.subr.bf16.mxu0 %v677
    %915 = vmatpush1.bf16.msra.mxu0 %v676
    %916 = vmatprep.subr.bf16.mxu0 %v685
    %917 = vmatpush1.bf16.msra.mxu0 %v684
    %918 = vmatprep.subr.bf16.mxu0 %v693
    %919 = vmatpush1.bf16.msra.mxu0 %v692
    %920 = vmatprep.subr.bf16.mxu0 %v701
    %921 = vmatpush1.bf16.msra.mxu0 %v700
    %922 = vmatprep.subr.bf16.mxu0 %v709
    %923 = vmatpush1.bf16.msra.mxu0 %v708
    %924 = vmatprep.subr.bf16.mxu0 %v717
    %925 = vmatpush1.bf16.msra.mxu0 %v716
    %926 = vmatprep.subr.bf16.mxu0 %v725
    %927 = vmatpush1.bf16.msra.mxu0 %v724
    %928 = vmatprep.subr.bf16.mxu0 %v733
    %929 = vmatpush1.bf16.msra.mxu0 %v732
    %930 = vmatprep.subr.bf16.mxu0 %v741
    %931 = vmatpush1.bf16.msra.mxu0 %v740
    %932 = vmatprep.subr.bf16.mxu0 %v749
    %933 = vmatpush1.bf16.msra.mxu0 %v748
    %934 = vmatprep.subr.bf16.mxu0 %v757
    %935 = vmatpush1.bf16.msra.mxu0 %v756
    %936 = vmatprep.subr.bf16.mxu0 %v765
    %937 = vmatpush1.bf16.msra.mxu0 %v764
    %938 = vmatprep.subr.bf16.mxu0 %v773
    %939 = vmatpush1.bf16.msra.mxu0 %v772
    %940 = vmatprep.mubr.bf16.mxu0 %v97
    %941 = vmatmul.mubr.bf16.gmra.mrb[0].mxu0 %v96
    %v942 = vpop.f32.mrb[0].mxu0
    %v943 = vadd.f32 %v231, %v942
    %v944 = vpop.f32.mrb[0].mxu0
    %v945 = vadd.f32 %v235, %v944
    %v946 = vpop.f32.mrb[0].mxu0
    %v947 = vpop.f32.mrb[0].mxu0
    %948 = vdwg.mxu0
    %949 = vmatprep.subr.bf16.mxu0 %v655
    %950 = vmatpush1.bf16.msra.mxu0 %v654
    %951 = vmatprep.subr.bf16.mxu0 %v663
    %952 = vmatpush1.bf16.msra.mxu0 %v662
    %953 = vmatprep.subr.bf16.mxu0 %v671
    %954 = vmatpush1.bf16.msra.mxu0 %v670
    %955 = vmatprep.subr.bf16.mxu0 %v679
    %956 = vmatpush1.bf16.msra.mxu0 %v678
    %957 = vmatprep.subr.bf16.mxu0 %v687
    %958 = vmatpush1.bf16.msra.mxu0 %v686
    %959 = vmatprep.subr.bf16.mxu0 %v695
    %960 = vmatpush1.bf16.msra.mxu0 %v694
    %961 = vmatprep.subr.bf16.mxu0 %v703
    %962 = vmatpush1.bf16.msra.mxu0 %v702
    %963 = vmatprep.subr.bf16.mxu0 %v711
    %964 = vmatpush1.bf16.msra.mxu0 %v710
    %965 = vmatprep.subr.bf16.mxu0 %v719
    %966 = vmatpush1.bf16.msra.mxu0 %v718
    %967 = vmatprep.subr.bf16.mxu0 %v727
    %968 = vmatpush1.bf16.msra.mxu0 %v726
    %969 = vmatprep.subr.bf16.mxu0 %v735
    %970 = vmatpush1.bf16.msra.mxu0 %v734
    %971 = vmatprep.subr.bf16.mxu0 %v743
    %972 = vmatpush1.bf16.msra.mxu0 %v742
    %973 = vmatprep.subr.bf16.mxu0 %v751
    %974 = vmatpush1.bf16.msra.mxu0 %v750
    %975 = vmatprep.subr.bf16.mxu0 %v759
    %976 = vmatpush1.bf16.msra.mxu0 %v758
    %977 = vmatprep.subr.bf16.mxu0 %v767
    %978 = vmatpush1.bf16.msra.mxu0 %v766
    %979 = vmatprep.subr.bf16.mxu0 %v775
    %980 = vmatpush1.bf16.msra.mxu0 %v774
    %981 = vmatprep.mubr.bf16.mxu0 %v97
    %982 = vmatmul.mubr.bf16.gmra.mrb[0].mxu0 %v96
    %v983 = vpop.f32.mrb[0].mxu0
    %v984 = vadd.f32 %v239, %v983
    %v985 = vpop.f32.mrb[0].mxu0
    %v986 = vadd.f32 %v243, %v985
    %v987 = vpop.f32.mrb[0].mxu0
    %v988 = vpop.f32.mrb[0].mxu0
    %989 = vdwg.mxu0
    %990 = vmatprep.subr.bf16.mxu0 %v657
    %991 = vmatpush1.bf16.msra.mxu0 %v656
    %992 = vmatprep.subr.bf16.mxu0 %v665
    %993 = vmatpush1.bf16.msra.mxu0 %v664
    %994 = vmatprep.subr.bf16.mxu0 %v673
    %995 = vmatpush1.bf16.msra.mxu0 %v672
    %996 = vmatprep.subr.bf16.mxu0 %v681
    %997 = vmatpush1.bf16.msra.mxu0 %v680
    %998 = vmatprep.subr.bf16.mxu0 %v689
    %999 = vmatpush1.bf16.msra.mxu0 %v688
    %1000 = vmatprep.subr.bf16.mxu0 %v697
    %1001 = vmatpush1.bf16.msra.mxu0 %v696
    %1002 = vmatprep.subr.bf16.mxu0 %v705
    %1003 = vmatpush1.bf16.msra.mxu0 %v704
    %1004 = vmatprep.subr.bf16.mxu0 %v713
    %1005 = vmatpush1.bf16.msra.mxu0 %v712
    %1006 = vmatprep.subr.bf16.mxu0 %v721
    %1007 = vmatpush1.bf16.msra.mxu0 %v720
    %1008 = vmatprep.subr.bf16.mxu0 %v729
    %1009 = vmatpush1.bf16.msra.mxu0 %v728
    %1010 = vmatprep.subr.bf16.mxu0 %v737
    %1011 = vmatpush1.bf16.msra.mxu0 %v736
    %1012 = vmatprep.subr.bf16.mxu0 %v745
    %1013 = vmatpush1.bf16.msra.mxu0 %v744
    %1014 = vmatprep.subr.bf16.mxu0 %v753
    %1015 = vmatpush1.bf16.msra.mxu0 %v752
    %1016 = vmatprep.subr.bf16.mxu0 %v761
    %1017 = vmatpush1.bf16.msra.mxu0 %v760
    %1018 = vmatprep.subr.bf16.mxu0 %v769
    %1019 = vmatpush1.bf16.msra.mxu0 %v768
    %1020 = vmatprep.subr.bf16.mxu0 %v777
    %1021 = vmatpush1.bf16.msra.mxu0 %v776
    %1022 = vmatprep.mubr.bf16.mxu0 %v97
    %1023 = vmatmul.mubr.bf16.gmra.mrb[0].mxu0 %v96
    %v1024 = vpop.f32.mrb[0].mxu0
    %v1025 = vadd.f32 %v247, %v1024
    %v1026 = vpop.f32.mrb[0].mxu0
    %v1027 = vadd.f32 %v251, %v1026
    %v1028 = vpop.f32.mrb[0].mxu0
    %v1029 = vpop.f32.mrb[0].mxu0
    %1030 = vdwg.mxu0
    %1031 = vmatprep.subr.bf16.mxu0 %v659
    %1032 = vmatpush1.bf16.msra.mxu0 %v658
    %1033 = vmatprep.subr.bf16.mxu0 %v667
    %1034 = vmatpush1.bf16.msra.mxu0 %v666
    %1035 = vmatprep.subr.bf16.mxu0 %v675
    %1036 = vmatpush1.bf16.msra.mxu0 %v674
    %1037 = vmatprep.subr.bf16.mxu0 %v683
    %1038 = vmatpush1.bf16.msra.mxu0 %v682
    %1039 = vmatprep.subr.bf16.mxu0 %v691
    %1040 = vmatpush1.bf16.msra.mxu0 %v690
    %1041 = vmatprep.subr.bf16.mxu0 %v699
    %1042 = vmatpush1.bf16.msra.mxu0 %v698
    %1043 = vmatprep.subr.bf16.mxu0 %v707
    %1044 = vmatpush1.bf16.msra.mxu0 %v706
    %1045 = vmatprep.subr.bf16.mxu0 %v715
    %1046 = vmatpush1.bf16.msra.mxu0 %v714
    %1047 = vmatprep.subr.bf16.mxu0 %v723
    %1048 = vmatpush1.bf16.msra.mxu0 %v722
    %1049 = vmatprep.subr.bf16.mxu0 %v731
    %1050 = vmatpush1.bf16.msra.mxu0 %v730
    %1051 = vmatprep.subr.bf16.mxu0 %v739
    %1052 = vmatpush1.bf16.msra.mxu0 %v738
    %1053 = vmatprep.subr.bf16.mxu0 %v747
    %1054 = vmatpush1.bf16.msra.mxu0 %v746
    %1055 = vmatprep.subr.bf16.mxu0 %v755
    %1056 = vmatpush1.bf16.msra.mxu0 %v754
    %1057 = vmatprep.subr.bf16.mxu0 %v763
    %1058 = vmatpush1.bf16.msra.mxu0 %v762
    %1059 = vmatprep.subr.bf16.mxu0 %v771
    %1060 = vmatpush1.bf16.msra.mxu0 %v770
    %1061 = vmatprep.subr.bf16.mxu0 %v779
    %1062 = vmatpush1.bf16.msra.mxu0 %v778
    %1063 = vmatprep.mubr.bf16.mxu0 %v97
    %1064 = vmatmul.mubr.bf16.gmra.mrb[0].mxu0 %v96
    %v1065 = vpop.f32.mrb[0].mxu0
    %v1066 = vadd.f32 %v255, %v1065
    %v1067 = vpop.f32.mrb[0].mxu0
    %v1068 = vadd.f32 %v259, %v1067
    %v1069 = vpop.f32.mrb[0].mxu0
    %v1070 = vpop.f32.mrb[0].mxu0
    %1071 = vdwg.mxu0
    %v1072 = vmax.f32 %v943, 0.0
    %v1073 = vmax.f32 %v945, 0.0
    %v1074 = vmax.f32 %v984, 0.0
    %v1075 = vmax.f32 %v986, 0.0
    %v1076 = vmax.f32 %v1025, 0.0
    %v1077 = vmax.f32 %v1027, 0.0
    %v1078 = vmax.f32 %v1066, 0.0
    %v1079 = vmax.f32 %v1068, 0.0
    %v1080 = vpack.c.bf16 %v1072, %v1072
    %v1081 = vpack.c.bf16 %v1073, %v1073
    %v1082 = vpack.c.bf16 %v1074, %v1074
    %v1083 = vpack.c.bf16 %v1075, %v1075
    %v1084 = vpack.c.bf16 %v1076, %v1076
    %v1085 = vpack.c.bf16 %v1077, %v1077
    %v1086 = vpack.c.bf16 %v1078, %v1078
    %v1087 = vpack.c.bf16 %v1079, %v1079
    %v1088 = vld [vmem:[#allocation8] sm:$0xf]
    %v1089 = vld [vmem:[#allocation8 + $0x4] sm:$0xf]
    %v1090 = vld [vmem:[#allocation8 + $0x8] sm:$0xf]
    %v1091 = vld [vmem:[#allocation8 + $0xc] sm:$0xf]
    %v1092 = vld [vmem:[#allocation8 + $0x10] sm:$0xf]
    %v1093 = vld [vmem:[#allocation8 + $0x14] sm:$0xf]
    %v1094 = vld [vmem:[#allocation8 + $0x18] sm:$0xf]
    %v1095 = vld [vmem:[#allocation8 + $0x1c] sm:$0xf]
    %v1096 = vld [vmem:[#allocation8 + $0x20] sm:$0xf]
    %v1097 = vld [vmem:[#allocation8 + $0x24] sm:$0xf]
    %v1098 = vld [vmem:[#allocation8 + $0x28] sm:$0xf]
    %v1099 = vld [vmem:[#allocation8 + $0x2c] sm:$0xf]
    %v1100 = vld [vmem:[#allocation8 + $0x30] sm:$0xf]
    %v1101 = vld [vmem:[#allocation8 + $0x34] sm:$0xf]
    %v1102 = vld [vmem:[#allocation8 + $0x38] sm:$0xf]
    %v1103 = vld [vmem:[#allocation8 + $0x3c] sm:$0xf]
    %v1104 = vld [vmem:[#allocation8 + $0x40] sm:$0xf]
    %v1105 = vld [vmem:[#allocation8 + $0x44] sm:$0xf]
    %v1106 = vld [vmem:[#allocation8 + $0x48] sm:$0xf]
    %v1107 = vld [vmem:[#allocation8 + $0x4c] sm:$0xf]
    %v1108 = vld [vmem:[#allocation8 + $0x50] sm:$0xf]
    %v1109 = vld [vmem:[#allocation8 + $0x54] sm:$0xf]
    %v1110 = vld [vmem:[#allocation8 + $0x58] sm:$0xf]
    %v1111 = vld [vmem:[#allocation8 + $0x5c] sm:$0xf]
    %v1112 = vld [vmem:[#allocation8 + $0x60] sm:$0xf]
    %v1113 = vld [vmem:[#allocation8 + $0x64] sm:$0xf]
    %v1114 = vld [vmem:[#allocation8 + $0x68] sm:$0xf]
    %v1115 = vld [vmem:[#allocation8 + $0x6c] sm:$0xf]
    %v1116 = vld [vmem:[#allocation8 + $0x70] sm:$0xf]
    %v1117 = vld [vmem:[#allocation8 + $0x74] sm:$0xf]
    %v1118 = vld [vmem:[#allocation8 + $0x78] sm:$0xf]
    %v1119 = vld [vmem:[#allocation8 + $0x7c] sm:$0xf]
    %v1120 = vld [vmem:[#allocation8 + $0x80] sm:$0xf]
    %v1121 = vld [vmem:[#allocation8 + $0x84] sm:$0xf]
    %v1122 = vld [vmem:[#allocation8 + $0x88] sm:$0xf]
    %v1123 = vld [vmem:[#allocation8 + $0x8c] sm:$0xf]
    %v1124 = vld [vmem:[#allocation8 + $0x90] sm:$0xf]
    %v1125 = vld [vmem:[#allocation8 + $0x94] sm:$0xf]
    %v1126 = vld [vmem:[#allocation8 + $0x98] sm:$0xf]
    %v1127 = vld [vmem:[#allocation8 + $0x9c] sm:$0xf]
    %v1128 = vld [vmem:[#allocation8 + $0xa0] sm:$0xf]
    %v1129 = vld [vmem:[#allocation8 + $0xa4] sm:$0xf]
    %v1130 = vld [vmem:[#allocation8 + $0xa8] sm:$0xf]
    %v1131 = vld [vmem:[#allocation8 + $0xac] sm:$0xf]
    %v1132 = vld [vmem:[#allocation8 + $0xb0] sm:$0xf]
    %v1133 = vld [vmem:[#allocation8 + $0xb4] sm:$0xf]
    %v1134 = vld [vmem:[#allocation8 + $0xb8] sm:$0xf]
    %v1135 = vld [vmem:[#allocation8 + $0xbc] sm:$0xf]
    %v1136 = vld [vmem:[#allocation8 + $0xc0] sm:$0xf]
    %v1137 = vld [vmem:[#allocation8 + $0xc4] sm:$0xf]
    %v1138 = vld [vmem:[#allocation8 + $0xc8] sm:$0xf]
    %v1139 = vld [vmem:[#allocation8 + $0xcc] sm:$0xf]
    %v1140 = vld [vmem:[#allocation8 + $0xd0] sm:$0xf]
    %v1141 = vld [vmem:[#allocation8 + $0xd4] sm:$0xf]
    %v1142 = vld [vmem:[#allocation8 + $0xd8] sm:$0xf]
    %v1143 = vld [vmem:[#allocation8 + $0xdc] sm:$0xf]
    %v1144 = vld [vmem:[#allocation8 + $0xe0] sm:$0xf]
    %v1145 = vld [vmem:[#allocation8 + $0xe4] sm:$0xf]
    %v1146 = vld [vmem:[#allocation8 + $0xe8] sm:$0xf]
    %v1147 = vld [vmem:[#allocation8 + $0xec] sm:$0xf]
    %v1148 = vld [vmem:[#allocation8 + $0xf0] sm:$0xf]
    %v1149 = vld [vmem:[#allocation8 + $0xf4] sm:$0xf]
    %v1150 = vld [vmem:[#allocation8 + $0xf8] sm:$0xf]
    %v1151 = vld [vmem:[#allocation8 + $0xfc] sm:$0xf]
    %v1152 = vld [vmem:[#allocation8 + $0x100] sm:$0xf]
    %v1153 = vld [vmem:[#allocation8 + $0x104] sm:$0xf]
    %v1154 = vld [vmem:[#allocation8 + $0x108] sm:$0xf]
    %v1155 = vld [vmem:[#allocation8 + $0x10c] sm:$0xf]
    %v1156 = vld [vmem:[#allocation8 + $0x110] sm:$0xf]
    %v1157 = vld [vmem:[#allocation8 + $0x114] sm:$0xf]
    %v1158 = vld [vmem:[#allocation8 + $0x118] sm:$0xf]
    %v1159 = vld [vmem:[#allocation8 + $0x11c] sm:$0xf]
    %v1160 = vld [vmem:[#allocation8 + $0x120] sm:$0xf]
    %v1161 = vld [vmem:[#allocation8 + $0x124] sm:$0xf]
    %v1162 = vld [vmem:[#allocation8 + $0x128] sm:$0xf]
    %v1163 = vld [vmem:[#allocation8 + $0x12c] sm:$0xf]
    %v1164 = vld [vmem:[#allocation8 + $0x130] sm:$0xf]
    %v1165 = vld [vmem:[#allocation8 + $0x134] sm:$0xf]
    %v1166 = vld [vmem:[#allocation8 + $0x138] sm:$0xf]
    %v1167 = vld [vmem:[#allocation8 + $0x13c] sm:$0xf]
    %v1168 = vld [vmem:[#allocation8 + $0x140] sm:$0xf]
    %v1169 = vld [vmem:[#allocation8 + $0x144] sm:$0xf]
    %v1170 = vld [vmem:[#allocation8 + $0x148] sm:$0xf]
    %v1171 = vld [vmem:[#allocation8 + $0x14c] sm:$0xf]
    %v1172 = vld [vmem:[#allocation8 + $0x150] sm:$0xf]
    %v1173 = vld [vmem:[#allocation8 + $0x154] sm:$0xf]
    %v1174 = vld [vmem:[#allocation8 + $0x158] sm:$0xf]
    %v1175 = vld [vmem:[#allocation8 + $0x15c] sm:$0xf]
    %v1176 = vld [vmem:[#allocation8 + $0x160] sm:$0xf]
    %v1177 = vld [vmem:[#allocation8 + $0x164] sm:$0xf]
    %v1178 = vld [vmem:[#allocation8 + $0x168] sm:$0xf]
    %v1179 = vld [vmem:[#allocation8 + $0x16c] sm:$0xf]
    %v1180 = vld [vmem:[#allocation8 + $0x170] sm:$0xf]
    %v1181 = vld [vmem:[#allocation8 + $0x174] sm:$0xf]
    %v1182 = vld [vmem:[#allocation8 + $0x178] sm:$0xf]
    %v1183 = vld [vmem:[#allocation8 + $0x17c] sm:$0xf]
    %v1184 = vld [vmem:[#allocation8 + $0x180] sm:$0xf]
    %v1185 = vld [vmem:[#allocation8 + $0x184] sm:$0xf]
    %v1186 = vld [vmem:[#allocation8 + $0x188] sm:$0xf]
    %v1187 = vld [vmem:[#allocation8 + $0x18c] sm:$0xf]
    %v1188 = vld [vmem:[#allocation8 + $0x190] sm:$0xf]
    %v1189 = vld [vmem:[#allocation8 + $0x194] sm:$0xf]
    %v1190 = vld [vmem:[#allocation8 + $0x198] sm:$0xf]
    %v1191 = vld [vmem:[#allocation8 + $0x19c] sm:$0xf]
    %v1192 = vld [vmem:[#allocation8 + $0x1a0] sm:$0xf]
    %v1193 = vld [vmem:[#allocation8 + $0x1a4] sm:$0xf]
    %v1194 = vld [vmem:[#allocation8 + $0x1a8] sm:$0xf]
    %v1195 = vld [vmem:[#allocation8 + $0x1ac] sm:$0xf]
    %v1196 = vld [vmem:[#allocation8 + $0x1b0] sm:$0xf]
    %v1197 = vld [vmem:[#allocation8 + $0x1b4] sm:$0xf]
    %v1198 = vld [vmem:[#allocation8 + $0x1b8] sm:$0xf]
    %v1199 = vld [vmem:[#allocation8 + $0x1bc] sm:$0xf]
    %v1200 = vld [vmem:[#allocation8 + $0x1c0] sm:$0xf]
    %v1201 = vld [vmem:[#allocation8 + $0x1c4] sm:$0xf]
    %v1202 = vld [vmem:[#allocation8 + $0x1c8] sm:$0xf]
    %v1203 = vld [vmem:[#allocation8 + $0x1cc] sm:$0xf]
    %v1204 = vld [vmem:[#allocation8 + $0x1d0] sm:$0xf]
    %v1205 = vld [vmem:[#allocation8 + $0x1d4] sm:$0xf]
    %v1206 = vld [vmem:[#allocation8 + $0x1d8] sm:$0xf]
    %v1207 = vld [vmem:[#allocation8 + $0x1dc] sm:$0xf]
    %v1208 = vld [vmem:[#allocation8 + $0x1e0] sm:$0xf]
    %v1209 = vld [vmem:[#allocation8 + $0x1e4] sm:$0xf]
    %v1210 = vld [vmem:[#allocation8 + $0x1e8] sm:$0xf]
    %v1211 = vld [vmem:[#allocation8 + $0x1ec] sm:$0xf]
    %v1212 = vld [vmem:[#allocation8 + $0x1f0] sm:$0xf]
    %v1213 = vld [vmem:[#allocation8 + $0x1f4] sm:$0xf]
    %v1214 = vld [vmem:[#allocation8 + $0x1f8] sm:$0xf]
    %v1215 = vld [vmem:[#allocation8 + $0x1fc] sm:$0xf]
    %v1216 = vld [vmem:[%s4] sm:$0x1]
    %v1218 = vlaneseq
    %v1219 = vshrl.u32 %v1218, 7
    %v1220 = vsub.s32 0, %v1219
    %v1221 = vrot.slane %v1216, %v1220
    %v1351 = vunpack.c.l.b16 %v1088
    %v1352 = vunpack.c.l.b16 %v1089
    %v1353 = vunpack.c.l.b16 %v1090
    %v1354 = vunpack.c.l.b16 %v1091
    %v1355 = vunpack.c.l.b16 %v1092
    %v1356 = vunpack.c.l.b16 %v1093
    %v1357 = vunpack.c.l.b16 %v1094
    %v1358 = vunpack.c.l.b16 %v1095
    %v1359 = vunpack.c.l.b16 %v1096
    %v1360 = vunpack.c.l.b16 %v1097
    %v1361 = vunpack.c.l.b16 %v1098
    %v1362 = vunpack.c.l.b16 %v1099
    %v1363 = vunpack.c.l.b16 %v1100
    %v1364 = vunpack.c.l.b16 %v1101
    %v1365 = vunpack.c.l.b16 %v1102
    %v1366 = vunpack.c.l.b16 %v1103
    %v1367 = vunpack.c.l.b16 %v1104
    %v1368 = vunpack.c.l.b16 %v1105
    %v1369 = vunpack.c.l.b16 %v1106
    %v1370 = vunpack.c.l.b16 %v1107
    %v1371 = vunpack.c.l.b16 %v1108
    %v1372 = vunpack.c.l.b16 %v1109
    %v1373 = vunpack.c.l.b16 %v1110
    %v1374 = vunpack.c.l.b16 %v1111
    %v1375 = vunpack.c.l.b16 %v1112
    %v1376 = vunpack.c.l.b16 %v1113
    %v1377 = vunpack.c.l.b16 %v1114
    %v1378 = vunpack.c.l.b16 %v1115
    %v1379 = vunpack.c.l.b16 %v1116
    %v1380 = vunpack.c.l.b16 %v1117
    %v1381 = vunpack.c.l.b16 %v1118
    %v1382 = vunpack.c.l.b16 %v1119
    %v1383 = vunpack.c.l.b16 %v1120
    %v1384 = vunpack.c.l.b16 %v1121
    %v1385 = vunpack.c.l.b16 %v1122
    %v1386 = vunpack.c.l.b16 %v1123
    %v1387 = vunpack.c.l.b16 %v1124
    %v1388 = vunpack.c.l.b16 %v1125
    %v1389 = vunpack.c.l.b16 %v1126
    %v1390 = vunpack.c.l.b16 %v1127
    %v1391 = vunpack.c.l.b16 %v1128
    %v1392 = vunpack.c.l.b16 %v1129
    %v1393 = vunpack.c.l.b16 %v1130
    %v1394 = vunpack.c.l.b16 %v1131
    %v1395 = vunpack.c.l.b16 %v1132
    %v1396 = vunpack.c.l.b16 %v1133
    %v1397 = vunpack.c.l.b16 %v1134
    %v1398 = vunpack.c.l.b16 %v1135
    %v1399 = vunpack.c.l.b16 %v1136
    %v1400 = vunpack.c.l.b16 %v1137
    %v1401 = vunpack.c.l.b16 %v1138
    %v1402 = vunpack.c.l.b16 %v1139
    %v1403 = vunpack.c.l.b16 %v1140
    %v1404 = vunpack.c.l.b16 %v1141
    %v1405 = vunpack.c.l.b16 %v1142
    %v1406 = vunpack.c.l.b16 %v1143
    %v1407 = vunpack.c.l.b16 %v1144
    %v1408 = vunpack.c.l.b16 %v1145
    %v1409 = vunpack.c.l.b16 %v1146
    %v1410 = vunpack.c.l.b16 %v1147
    %v1411 = vunpack.c.l.b16 %v1148
    %v1412 = vunpack.c.l.b16 %v1149
    %v1413 = vunpack.c.l.b16 %v1150
    %v1414 = vunpack.c.l.b16 %v1151
    %v1415 = vunpack.c.l.b16 %v1152
    %v1416 = vunpack.c.l.b16 %v1153
    %v1417 = vunpack.c.l.b16 %v1154
    %v1418 = vunpack.c.l.b16 %v1155
    %v1419 = vunpack.c.l.b16 %v1156
    %v1420 = vunpack.c.l.b16 %v1157
    %v1421 = vunpack.c.l.b16 %v1158
    %v1422 = vunpack.c.l.b16 %v1159
    %v1423 = vunpack.c.l.b16 %v1160
    %v1424 = vunpack.c.l.b16 %v1161
    %v1425 = vunpack.c.l.b16 %v1162
    %v1426 = vunpack.c.l.b16 %v1163
    %v1427 = vunpack.c.l.b16 %v1164
    %v1428 = vunpack.c.l.b16 %v1165
    %v1429 = vunpack.c.l.b16 %v1166
    %v1430 = vunpack.c.l.b16 %v1167
    %v1431 = vunpack.c.l.b16 %v1168
    %v1432 = vunpack.c.l.b16 %v1169
    %v1433 = vunpack.c.l.b16 %v1170
    %v1434 = vunpack.c.l.b16 %v1171
    %v1435 = vunpack.c.l.b16 %v1172
    %v1436 = vunpack.c.l.b16 %v1173
    %v1437 = vunpack.c.l.b16 %v1174
    %v1438 = vunpack.c.l.b16 %v1175
    %v1439 = vunpack.c.l.b16 %v1176
    %v1440 = vunpack.c.l.b16 %v1177
    %v1441 = vunpack.c.l.b16 %v1178
    %v1442 = vunpack.c.l.b16 %v1179
    %v1443 = vunpack.c.l.b16 %v1180
    %v1444 = vunpack.c.l.b16 %v1181
    %v1445 = vunpack.c.l.b16 %v1182
    %v1446 = vunpack.c.l.b16 %v1183
    %v1447 = vunpack.c.l.b16 %v1184
    %v1448 = vunpack.c.l.b16 %v1185
    %v1449 = vunpack.c.l.b16 %v1186
    %v1450 = vunpack.c.l.b16 %v1187
    %v1451 = vunpack.c.l.b16 %v1188
    %v1452 = vunpack.c.l.b16 %v1189
    %v1453 = vunpack.c.l.b16 %v1190
    %v1454 = vunpack.c.l.b16 %v1191
    %v1455 = vunpack.c.l.b16 %v1192
    %v1456 = vunpack.c.l.b16 %v1193
    %v1457 = vunpack.c.l.b16 %v1194
    %v1458 = vunpack.c.l.b16 %v1195
    %v1459 = vunpack.c.l.b16 %v1196
    %v1460 = vunpack.c.l.b16 %v1197
    %v1461 = vunpack.c.l.b16 %v1198
    %v1462 = vunpack.c.l.b16 %v1199
    %v1463 = vunpack.c.l.b16 %v1200
    %v1464 = vunpack.c.l.b16 %v1201
    %v1465 = vunpack.c.l.b16 %v1202
    %v1466 = vunpack.c.l.b16 %v1203
    %v1467 = vunpack.c.l.b16 %v1204
    %v1468 = vunpack.c.l.b16 %v1205
    %v1469 = vunpack.c.l.b16 %v1206
    %v1470 = vunpack.c.l.b16 %v1207
    %v1471 = vunpack.c.l.b16 %v1208
    %v1472 = vunpack.c.l.b16 %v1209
    %v1473 = vunpack.c.l.b16 %v1210
    %v1474 = vunpack.c.l.b16 %v1211
    %v1475 = vunpack.c.l.b16 %v1212
    %v1476 = vunpack.c.l.b16 %v1213
    %v1477 = vunpack.c.l.b16 %v1214
    %v1478 = vunpack.c.l.b16 %v1215
    %v1479 = vpack.c.b16 %v1352, %v1351
    %v1480 = vpack.c.b16 %v1354, %v1353
    %v1481 = vpack.c.b16 %v1356, %v1355
    %v1482 = vpack.c.b16 %v1358, %v1357
    %v1483 = vpack.c.b16 %v1360, %v1359
    %v1484 = vpack.c.b16 %v1362, %v1361
    %v1485 = vpack.c.b16 %v1364, %v1363
    %v1486 = vpack.c.b16 %v1366, %v1365
    %v1487 = vpack.c.b16 %v1368, %v1367
    %v1488 = vpack.c.b16 %v1370, %v1369
    %v1489 = vpack.c.b16 %v1372, %v1371
    %v1490 = vpack.c.b16 %v1374, %v1373
    %v1491 = vpack.c.b16 %v1376, %v1375
    %v1492 = vpack.c.b16 %v1378, %v1377
    %v1493 = vpack.c.b16 %v1380, %v1379
    %v1494 = vpack.c.b16 %v1382, %v1381
    %v1495 = vpack.c.b16 %v1384, %v1383
    %v1496 = vpack.c.b16 %v1386, %v1385
    %v1497 = vpack.c.b16 %v1388, %v1387
    %v1498 = vpack.c.b16 %v1390, %v1389
    %v1499 = vpack.c.b16 %v1392, %v1391
    %v1500 = vpack.c.b16 %v1394, %v1393
    %v1501 = vpack.c.b16 %v1396, %v1395
    %v1502 = vpack.c.b16 %v1398, %v1397
    %v1503 = vpack.c.b16 %v1400, %v1399
    %v1504 = vpack.c.b16 %v1402, %v1401
    %v1505 = vpack.c.b16 %v1404, %v1403
    %v1506 = vpack.c.b16 %v1406, %v1405
    %v1507 = vpack.c.b16 %v1408, %v1407
    %v1508 = vpack.c.b16 %v1410, %v1409
    %v1509 = vpack.c.b16 %v1412, %v1411
    %v1510 = vpack.c.b16 %v1414, %v1413
    %v1511 = vpack.c.b16 %v1416, %v1415
    %v1512 = vpack.c.b16 %v1418, %v1417
    %v1513 = vpack.c.b16 %v1420, %v1419
    %v1514 = vpack.c.b16 %v1422, %v1421
    %v1515 = vpack.c.b16 %v1424, %v1423
    %v1516 = vpack.c.b16 %v1426, %v1425
    %v1517 = vpack.c.b16 %v1428, %v1427
    %v1518 = vpack.c.b16 %v1430, %v1429
    %v1519 = vpack.c.b16 %v1432, %v1431
    %v1520 = vpack.c.b16 %v1434, %v1433
    %v1521 = vpack.c.b16 %v1436, %v1435
    %v1522 = vpack.c.b16 %v1438, %v1437
    %v1523 = vpack.c.b16 %v1440, %v1439
    %v1524 = vpack.c.b16 %v1442, %v1441
    %v1525 = vpack.c.b16 %v1444, %v1443
    %v1526 = vpack.c.b16 %v1446, %v1445
    %v1527 = vpack.c.b16 %v1448, %v1447
    %v1528 = vpack.c.b16 %v1450, %v1449
    %v1529 = vpack.c.b16 %v1452, %v1451
    %v1530 = vpack.c.b16 %v1454, %v1453
    %v1531 = vpack.c.b16 %v1456, %v1455
    %v1532 = vpack.c.b16 %v1458, %v1457
    %v1533 = vpack.c.b16 %v1460, %v1459
    %v1534 = vpack.c.b16 %v1462, %v1461
    %v1535 = vpack.c.b16 %v1464, %v1463
    %v1536 = vpack.c.b16 %v1466, %v1465
    %v1537 = vpack.c.b16 %v1468, %v1467
    %v1538 = vpack.c.b16 %v1470, %v1469
    %v1539 = vpack.c.b16 %v1472, %v1471
    %v1540 = vpack.c.b16 %v1474, %v1473
    %v1541 = vpack.c.b16 %v1476, %v1475
    %v1542 = vpack.c.b16 %v1478, %v1477
    %1607 = vmatprep.subr.bf16.mxu0 0
    %1608 = vmatpush1.bf16.msra.mxu0 %v1479
    %1609 = vmatprep.subr.bf16.mxu0 0
    %1610 = vmatpush1.bf16.msra.mxu0 %v1480
    %1611 = vmatprep.subr.bf16.mxu0 0
    %1612 = vmatpush1.bf16.msra.mxu0 %v1481
    %1613 = vmatprep.subr.bf16.mxu0 0
    %1614 = vmatpush1.bf16.msra.mxu0 %v1482
    %1615 = vmatprep.subr.bf16.mxu0 0
    %1616 = vmatpush1.bf16.msra.mxu0 %v1483
    %1617 = vmatprep.subr.bf16.mxu0 0
    %1618 = vmatpush1.bf16.msra.mxu0 %v1484
    %1619 = vmatprep.subr.bf16.mxu0 0
    %1620 = vmatpush1.bf16.msra.mxu0 %v1485
    %1621 = vmatprep.subr.bf16.mxu0 0
    %1622 = vmatpush1.bf16.msra.mxu0 %v1486
    %1623 = vmatprep.subr.bf16.mxu0 0
    %1624 = vmatpush1.bf16.msra.mxu0 %v1487
    %1625 = vmatprep.subr.bf16.mxu0 0
    %1626 = vmatpush1.bf16.msra.mxu0 %v1488
    %1627 = vmatprep.subr.bf16.mxu0 0
    %1628 = vmatpush1.bf16.msra.mxu0 %v1489
    %1629 = vmatprep.subr.bf16.mxu0 0
    %1630 = vmatpush1.bf16.msra.mxu0 %v1490
    %1631 = vmatprep.subr.bf16.mxu0 0
    %1632 = vmatpush1.bf16.msra.mxu0 %v1491
    %1633 = vmatprep.subr.bf16.mxu0 0
    %1634 = vmatpush1.bf16.msra.mxu0 %v1492
    %1635 = vmatprep.subr.bf16.mxu0 0
    %1636 = vmatpush1.bf16.msra.mxu0 %v1493
    %1637 = vmatprep.subr.bf16.mxu0 0
    %1638 = vmatpush1.bf16.msra.mxu0 %v1494
    %1639 = vmatprep.mubr.bf16.mxu0 %v1081
    %1640 = vmatmul.mubr.bf16.gmra.mrb[0].mxu0 %v1080
    %v1641 = vpop.f32.mrb[0].mxu0
    %v1642 = vadd.f32 %v1221, %v1641
    %v1643 = vpop.f32.mrb[0].mxu0
    %v1644 = vpop.f32.mrb[0].mxu0
    %v1645 = vpop.f32.mrb[0].mxu0
    %1646 = vdwg.mxu0
    %1647 = vmatprep.subr.bf16.mxu0 0
    %1648 = vmatpush1.bf16.msra.mxu0 %v1495
    %1649 = vmatprep.subr.bf16.mxu0 0
    %1650 = vmatpush1.bf16.msra.mxu0 %v1496
    %1651 = vmatprep.subr.bf16.mxu0 0
    %1652 = vmatpush1.bf16.msra.mxu0 %v1497
    %1653 = vmatprep.subr.bf16.mxu0 0
    %1654 = vmatpush1.bf16.msra.mxu0 %v1498
    %1655 = vmatprep.subr.bf16.mxu0 0
    %1656 = vmatpush1.bf16.msra.mxu0 %v1499
    %1657 = vmatprep.subr.bf16.mxu0 0
    %1658 = vmatpush1.bf16.msra.mxu0 %v1500
    %1659 = vmatprep.subr.bf16.mxu0 0
    %1660 = vmatpush1.bf16.msra.mxu0 %v1501
    %1661 = vmatprep.subr.bf16.mxu0 0
    %1662 = vmatpush1.bf16.msra.mxu0 %v1502
    %1663 = vmatprep.subr.bf16.mxu0 0
    %1664 = vmatpush1.bf16.msra.mxu0 %v1503
    %1665 = vmatprep.subr.bf16.mxu0 0
    %1666 = vmatpush1.bf16.msra.mxu0 %v1504
    %1667 = vmatprep.subr.bf16.mxu0 0
    %1668 = vmatpush1.bf16.msra.mxu0 %v1505
    %1669 = vmatprep.subr.bf16.mxu0 0
    %1670 = vmatpush1.bf16.msra.mxu0 %v1506
    %1671 = vmatprep.subr.bf16.mxu0 0
    %1672 = vmatpush1.bf16.msra.mxu0 %v1507
    %1673 = vmatprep.subr.bf16.mxu0 0
    %1674 = vmatpush1.bf16.msra.mxu0 %v1508
    %1675 = vmatprep.subr.bf16.mxu0 0
    %1676 = vmatpush1.bf16.msra.mxu0 %v1509
    %1677 = vmatprep.subr.bf16.mxu0 0
    %1678 = vmatpush1.bf16.msra.mxu0 %v1510
    %1679 = vmatprep.mubr.bf16.mxu0 %v1083
    %1680 = vmatmul.mubr.bf16.gmra.mrb[0].mxu0 %v1082
    %v1681 = vpop.f32.mrb[0].mxu0
    %v1682 = vadd.f32 %v1642, %v1681
    %v1683 = vpop.f32.mrb[0].mxu0
    %v1684 = vpop.f32.mrb[0].mxu0
    %v1685 = vpop.f32.mrb[0].mxu0
    %1686 = vdwg.mxu0
    %1687 = vmatprep.subr.bf16.mxu0 0
    %1688 = vmatpush1.bf16.msra.mxu0 %v1511
    %1689 = vmatprep.subr.bf16.mxu0 0
    %1690 = vmatpush1.bf16.msra.mxu0 %v1512
    %1691 = vmatprep.subr.bf16.mxu0 0
    %1692 = vmatpush1.bf16.msra.mxu0 %v1513
    %1693 = vmatprep.subr.bf16.mxu0 0
    %1694 = vmatpush1.bf16.msra.mxu0 %v1514
    %1695 = vmatprep.subr.bf16.mxu0 0
    %1696 = vmatpush1.bf16.msra.mxu0 %v1515
    %1697 = vmatprep.subr.bf16.mxu0 0
    %1698 = vmatpush1.bf16.msra.mxu0 %v1516
    %1699 = vmatprep.subr.bf16.mxu0 0
    %1700 = vmatpush1.bf16.msra.mxu0 %v1517
    %1701 = vmatprep.subr.bf16.mxu0 0
    %1702 = vmatpush1.bf16.msra.mxu0 %v1518
    %1703 = vmatprep.subr.bf16.mxu0 0
    %1704 = vmatpush1.bf16.msra.mxu0 %v1519
    %1705 = vmatprep.subr.bf16.mxu0 0
    %1706 = vmatpush1.bf16.msra.mxu0 %v1520
    %1707 = vmatprep.subr.bf16.mxu0 0
    %1708 = vmatpush1.bf16.msra.mxu0 %v1521
    %1709 = vmatprep.subr.bf16.mxu0 0
    %1710 = vmatpush1.bf16.msra.mxu0 %v1522
    %1711 = vmatprep.subr.bf16.mxu0 0
    %1712 = vmatpush1.bf16.msra.mxu0 %v1523
    %1713 = vmatprep.subr.bf16.mxu0 0
    %1714 = vmatpush1.bf16.msra.mxu0 %v1524
    %1715 = vmatprep.subr.bf16.mxu0 0
    %1716 = vmatpush1.bf16.msra.mxu0 %v1525
    %1717 = vmatprep.subr.bf16.mxu0 0
    %1718 = vmatpush1.bf16.msra.mxu0 %v1526
    %1719 = vmatprep.mubr.bf16.mxu0 %v1085
    %1720 = vmatmul.mubr.bf16.gmra.mrb[0].mxu0 %v1084
    %v1721 = vpop.f32.mrb[0].mxu0
    %v1722 = vadd.f32 %v1682, %v1721
    %v1723 = vpop.f32.mrb[0].mxu0
    %v1724 = vpop.f32.mrb[0].mxu0
    %v1725 = vpop.f32.mrb[0].mxu0
    %1726 = vdwg.mxu0
    %1727 = vmatprep.subr.bf16.mxu0 0
    %1728 = vmatpush1.bf16.msra.mxu0 %v1527
    %1729 = vmatprep.subr.bf16.mxu0 0
    %1730 = vmatpush1.bf16.msra.mxu0 %v1528
    %1731 = vmatprep.subr.bf16.mxu0 0
    %1732 = vmatpush1.bf16.msra.mxu0 %v1529
    %1733 = vmatprep.subr.bf16.mxu0 0
    %1734 = vmatpush1.bf16.msra.mxu0 %v1530
    %1735 = vmatprep.subr.bf16.mxu0 0
    %1736 = vmatpush1.bf16.msra.mxu0 %v1531
    %1737 = vmatprep.subr.bf16.mxu0 0
    %1738 = vmatpush1.bf16.msra.mxu0 %v1532
    %1739 = vmatprep.subr.bf16.mxu0 0
    %1740 = vmatpush1.bf16.msra.mxu0 %v1533
    %1741 = vmatprep.subr.bf16.mxu0 0
    %1742 = vmatpush1.bf16.msra.mxu0 %v1534
    %1743 = vmatprep.subr.bf16.mxu0 0
    %1744 = vmatpush1.bf16.msra.mxu0 %v1535
    %1745 = vmatprep.subr.bf16.mxu0 0
    %1746 = vmatpush1.bf16.msra.mxu0 %v1536
    %1747 = vmatprep.subr.bf16.mxu0 0
    %1748 = vmatpush1.bf16.msra.mxu0 %v1537
    %1749 = vmatprep.subr.bf16.mxu0 0
    %1750 = vmatpush1.bf16.msra.mxu0 %v1538
    %1751 = vmatprep.subr.bf16.mxu0 0
    %1752 = vmatpush1.bf16.msra.mxu0 %v1539
    %1753 = vmatprep.subr.bf16.mxu0 0
    %1754 = vmatpush1.bf16.msra.mxu0 %v1540
    %1755 = vmatprep.subr.bf16.mxu0 0
    %1756 = vmatpush1.bf16.msra.mxu0 %v1541
    %1757 = vmatprep.subr.bf16.mxu0 0
    %1758 = vmatpush1.bf16.msra.mxu0 %v1542
    %1759 = vmatprep.mubr.bf16.mxu0 %v1087
    %1760 = vmatmul.mubr.bf16.gmra.mrb[0].mxu0 %v1086
    %v1761 = vpop.f32.mrb[0].mxu0
    %v1762 = vadd.f32 %v1722, %v1761
    %v1763 = vpop.f32.mrb[0].mxu0
    %v1764 = vpop.f32.mrb[0].mxu0
    %v1765 = vpop.f32.mrb[0].mxu0
    %1766 = vdwg.mxu0
    %v1767 = vmax.f32 %v1762, 0.0
    %v1768 = vpack.c.bf16 %v1767, %v1767
    %v1769 = vld [vmem:[#allocation10] sm:$0xf]
    %v1770 = vld [vmem:[#allocation10 + $0x4] sm:$0xf]
    %v1771 = vld [vmem:[#allocation10 + $0x8] sm:$0xf]
    %v1772 = vld [vmem:[#allocation10 + $0xc] sm:$0xf]
    %v1773 = vld [vmem:[#allocation10 + $0x10] sm:$0xf]
    %v1774 = vld [vmem:[#allocation10 + $0x14] sm:$0xf]
    %v1775 = vld [vmem:[#allocation10 + $0x18] sm:$0xf]
    %v1776 = vld [vmem:[#allocation10 + $0x1c] sm:$0xf]
    %v1777 = vld [vmem:[#allocation10 + $0x20] sm:$0xf]
    %v1778 = vld [vmem:[#allocation10 + $0x24] sm:$0xf]
    %v1779 = vld [vmem:[#allocation10 + $0x28] sm:$0xf]
    %v1780 = vld [vmem:[#allocation10 + $0x2c] sm:$0xf]
    %v1781 = vld [vmem:[#allocation10 + $0x30] sm:$0xf]
    %v1782 = vld [vmem:[#allocation10 + $0x34] sm:$0xf]
    %v1783 = vld [vmem:[#allocation10 + $0x38] sm:$0xf]
    %v1784 = vld [vmem:[#allocation10 + $0x3c] sm:$0xf]
    %v1785 = vld [vmem:[%s6] sm:$0x1]
    %v1787 = vlaneseq
    %v1788 = vshrl.u32 %v1787, 7
    %v1789 = vsub.s32 0, %v1788
    %v1790 = vrot.slane %v1785, %v1789
    %v1808 = vunpack.c.l.b16 %v1769
    %v1809 = vunpack.c.l.b16 %v1770
    %v1810 = vunpack.c.l.b16 %v1771
    %v1811 = vunpack.c.l.b16 %v1772
    %v1812 = vunpack.c.l.b16 %v1773
    %v1813 = vunpack.c.l.b16 %v1774
    %v1814 = vunpack.c.l.b16 %v1775
    %v1815 = vunpack.c.l.b16 %v1776
    %v1816 = vunpack.c.l.b16 %v1777
    %v1817 = vunpack.c.l.b16 %v1778
    %v1818 = vunpack.c.l.b16 %v1779
    %v1819 = vunpack.c.l.b16 %v1780
    %v1820 = vunpack.c.l.b16 %v1781
    %v1821 = vunpack.c.l.b16 %v1782
    %v1822 = vunpack.c.l.b16 %v1783
    %v1823 = vunpack.c.l.b16 %v1784
    %v1824 = vpack.c.b16 %v1809, %v1808
    %v1825 = vpack.c.b16 %v1811, %v1810
    %v1826 = vpack.c.b16 %v1813, %v1812
    %v1827 = vpack.c.b16 %v1815, %v1814
    %v1828 = vpack.c.b16 %v1817, %v1816
    %v1829 = vpack.c.b16 %v1819, %v1818
    %v1830 = vpack.c.b16 %v1821, %v1820
    %v1831 = vpack.c.b16 %v1823, %v1822
    %1840 = vmatprep.subr.bf16.mxu0 0
    %1841 = vmatpush1.bf16.msra.mxu0 %v1824
    %1842 = vmatprep.subr.bf16.mxu0 0
    %1843 = vmatpush1.bf16.msra.mxu0 %v1825
    %1844 = vmatprep.subr.bf16.mxu0 0
    %1845 = vmatpush1.bf16.msra.mxu0 %v1826
    %1846 = vmatprep.subr.bf16.mxu0 0
    %1847 = vmatpush1.bf16.msra.mxu0 %v1827
    %1848 = vmatprep.subr.bf16.mxu0 0
    %1849 = vmatpush1.bf16.msra.mxu0 %v1828
    %1850 = vmatprep.subr.bf16.mxu0 0
    %1851 = vmatpush1.bf16.msra.mxu0 %v1829
    %1852 = vmatprep.subr.bf16.mxu0 0
    %1853 = vmatpush1.bf16.msra.mxu0 %v1830
    %1854 = vmatprep.subr.bf16.mxu0 0
    %1855 = vmatpush1.bf16.msra.mxu0 %v1831
    %1856 = vmatprep.subr.bf16.mxu0 0
    %1857 = vmatpush1.bf16.msra.mxu0 0
    %1858 = vmatprep.subr.bf16.mxu0 0
    %1859 = vmatpush1.bf16.msra.mxu0 0
    %1860 = vmatprep.subr.bf16.mxu0 0
    %1861 = vmatpush1.bf16.msra.mxu0 0
    %1862 = vmatprep.subr.bf16.mxu0 0
    %1863 = vmatpush1.bf16.msra.mxu0 0
    %1864 = vmatprep.subr.bf16.mxu0 0
    %1865 = vmatpush1.bf16.msra.mxu0 0
    %1866 = vmatprep.subr.bf16.mxu0 0
    %1867 = vmatpush1.bf16.msra.mxu0 0
    %1868 = vmatprep.subr.bf16.mxu0 0
    %1869 = vmatpush1.bf16.msra.mxu0 0
    %1870 = vmatprep.subr.bf16.mxu0 0
    %1871 = vmatpush1.bf16.msra.mxu0 0
    %1872 = vmatprep.mubr.bf16.mxu0 0
    %1873 = vmatmul.mubr.bf16.gmra.mrb[0].mxu0 %v1768
    %v1874 = vpop.f32.mrb[0].mxu0
    %v1875 = vadd.f32 %v1790, %v1874
    %v1876 = vpop.f32.mrb[0].mxu0
    %v1877 = vpop.f32.mrb[0].mxu0
    %v1878 = vpop.f32.mrb[0].mxu0
    %1879 = vdwg.mxu0
    %1880 = vst [vmem:[#allocation11] sm:$0xff] %v1875
    // Predicated region
    $region50: #{tpu_custom_call.1} parent=1 // pred_check
      _
    $region51: #{tpu_custom_call.1} parent=1 // pred_check_branch
      %1882 = sbr.rel (0) target = $region53
    $region52: #{tpu_custom_call.1} parent=1 // pred_region
      %s1884 = ssub.s32 128, 128
      %1885 = vsyncadd [#allocation4], %s1884
      %s1887 = sshll.u32 [#allocation11], 4
      %s1888 = int_to_ptr.vmem [resolvable:$true] %s1887
      %1890 = dma.vmem_to_hbm [thread:$0]  %s1888, 128, %s7, [#allocation4]
    $region53: #{tpu_custom_call.1} parent=1 // pred_fallthru
      _
    // Predicated region
    $region54: #{tpu_custom_call.1} parent=1 // pred_check
      _
    $region55: #{tpu_custom_call.1} parent=1 // pred_check_branch
      %1892 = sbr.rel (0) target = $region57
    $region56: #{tpu_custom_call.1} parent=1 // pred_region
      %1893 = dma.done [#allocation4], 128
    $region57: #{tpu_custom_call.1} parent=1 // pred_fallthru
      _
    %1894 = vsyncpa [#allocation3], 1
    %1895 = vsyncpa [#allocation6], 1
    %1896 = vsyncpa [#allocation9], 1
    %1897 = vsyncpa [#allocation4], 1

</llo_original>
